<compile_context>
chip_gen: v6e
topology: v6e:2x2x1
jax: 0.10.0
libtpu: 0.0.40
codegen_flags: <defaults>
</compile_context>

<pallas_src>
import math

import jax
import jax.numpy as jnp
from jax import lax
from jax.experimental import pallas as pl
from jax.experimental.pallas import tpu as pltpu

LANE = 128
SUBLANE = 8
_HIDDEN = 128          # SPADE2d hidden_dim (hard-coded in the PyTorch module)
_LRELU_SLOPE = 0.2     # nn.LeakyReLU(0.2)
_IN_EPS = 1e-5         # nn.InstanceNorm2d default eps


# ----------------------------------------------------------------------------- utils
def _ru(x, m):
    return ((x + m - 1) // m) * m


def _pad_to(a, shape):
    pads = [(0, t - s) for s, t in zip(a.shape, shape)]
    if all(p == (0, 0) for p in pads):
        return a
    return jnp.pad(a, pads)


def _spectral_normalize(w, n_iter=10, eps=1e-12):
    """Forward-pass weight of nn.utils.spectral_norm: w / sigma_max(w).

    PyTorch tracks sigma with a running one-step power iteration; here we use a
    short converged power iteration (the limit of that estimate).  For serving,
    call prepare_params() once and pass prenormalized=True to spade_block.
    """
    def body(_, u):
        v = w.T @ u
        v = v / (jnp.linalg.norm(v) + eps)
        u = w @ v
        u = u / (jnp.linalg.norm(u) + eps)
        return u

    u0 = jnp.full((w.shape[0],), 1.0 / math.sqrt(w.shape[0]), w.dtype)
    u = lax.fori_loop(0, n_iter, body, u0)
    v = w.T @ u
    v = v / (jnp.linalg.norm(v) + eps)
    sigma = u @ (w @ v)
    return w / sigma


def prepare_params(params):
    """One-time preprocessing for serving: spectral-normalize the conv weights."""
    p = dict(params)
    p["conv0_w"] = _spectral_normalize(params["conv0_w"])
    p["conv1_w"] = _spectral_normalize(params["conv1_w"])
    return p


def _vmem_budget():
    """Generation-aware VMEM sizing (v5e/v6e: 128 MiB physical, v7x: 64 MiB)."""
    phys = 64 * 1024 * 1024
    try:
        phys = int(getattr(pltpu.get_tpu_info(), "vmem_capacity_bytes", phys)) or phys
    except Exception:  # pragma: no cover - conservative fallback
        pass
    budget = max(int(phys * 0.55), 16 * 1024 * 1024)
    limit = max(min(phys - 4 * 1024 * 1024, int(phys * 0.85)), 32 * 1024 * 1024)
    return budget, int(limit)


def _pick_token_tile(n_tokens, *, act_bytes, w_bytes, cin_p, cout_p, s_p, hd_p,
                     spatial_style, with_skip, budget_bytes, target):
    """Largest sublane-aligned token tile <= target whose working set (streaming
    tiles double-buffered + double-buffered resident weights + f32 temporaries)
    fits the per-generation VMEM budget."""
    tm = min(_ru(target, SUBLANE), _ru(n_tokens, SUBLANE))

    # Resident operands (constant index_map blocks are still double-buffered).
    # TODO(synk): pl.Buffered(1) on these specs would halve this; accounted instead.
    resident = 2 * w_bytes * cin_p * cout_p + 2 * 4 * cout_p          # conv w + b
    resident += 2 * 4 * 4 * cin_p                                     # mean/istd (+const gamma/beta)
    if spatial_style:
        resident += 2 * w_bytes * (s_p * hd_p + 2 * hd_p * cin_p)     # SPADE MLP weights
        resident += 2 * 4 * (hd_p + 2 * cin_p)                        # SPADE MLP biases

    def bytes_for(t):
        stream = (cin_p + cout_p) * t * act_bytes                     # x tile + out tile
        if spatial_style:
            stream += s_p * t * act_bytes
        if with_skip:
            stream += cout_p * t * act_bytes
        stream += 2 * cout_p * 4                                      # per-tile stats
        temps = t * (2 * cin_p + 2 * cout_p) * 4                      # f32 temporaries
        if spatial_style:
            temps += t * (hd_p + 2 * cin_p) * 4
        return 2 * stream + resident + temps

    while tm > SUBLANE and bytes_for(tm) > budget_bytes:
        tm = max(SUBLANE, ((tm // 2) // SUBLANE) * SUBLANE)
    return tm


# ----------------------------------------------------------------------------- kernel
def _make_stage_kernel(*, spatial_style, with_skip, emit_stats, n_valid, tm):
    """One fused stage: instance-norm(x)*gamma+beta -> LeakyReLU -> 1x1 conv [+skip].

    The '+1' of `gamma = 1 + mlp_gamma(actv)` is pre-folded into the gamma bias /
    precomputed gamma by the wrapper.
    """
    def kernel(*refs):
        it = iter(refs)
        x_ref = next(it)
        s_ref = next(it) if spatial_style else None
        mean_ref = next(it)
        istd_ref = next(it)
        if spatial_style:
            ws_ref = next(it); bs_ref = next(it)
            wg_ref = next(it); bg_ref = next(it)
            wb_ref = next(it); bb_ref = next(it)
        else:
            gamma_ref = next(it); beta_ref = next(it)
        wc_ref = next(it)
        bc_ref = next(it)
        skip_ref = next(it) if with_skip else None
        o_ref = next(it)
        stat_ref = next(it) if emit_stats else None

        f32 = jnp.float32
        if spatial_style:
            # SPADE modulation from per-pixel style tokens (spatially varying case).
            s = s_ref[0]                                              # (tm, S)
            actv = jnp.dot(s, ws_ref[...], preferred_element_type=f32) + bs_ref[...]
            actv = jnp.maximum(actv, 0.0).astype(ws_ref.dtype)        # ReLU
            gamma = jnp.dot(actv, wg_ref[...], preferred_element_type=f32) + bg_ref[...]
            beta = jnp.dot(actv, wb_ref[...], preferred_element_type=f32) + bb_ref[...]
        else:
            # Constant-per-batch style: gamma/beta precomputed once in the wrapper.
            gamma = gamma_ref[0]                                      # (1, C) f32
            beta = beta_ref[0]

        # InstanceNorm2d apply (per-(batch, channel) stats precomputed, f32).
        xn = (x_ref[0].astype(f32) - mean_ref[0]) * istd_ref[0]       # (tm, Cin) f32
        y = xn * gamma + beta
        y = jnp.where(y >= 0.0, y, _LRELU_SLOPE * y)                  # LeakyReLU(0.2)

        out = jnp.dot(y.astype(wc_ref.dtype), wc_ref[...],
                      preferred_element_type=f32) + bc_ref[...]       # (tm, Cout) f32
        if with_skip:
            out = out + skip_ref[0].astype(f32)
        o_ref[0] = out.astype(o_ref.dtype)

        if emit_stats:
            # Masked per-tile partial sum / sum-of-squares of the f32 output so the
            # next stage's instance-norm stats need no extra HBM pass over h.
            tile = pl.program_id(0)
            row = lax.broadcasted_iota(jnp.int32, (tm, 1), 0)
            valid = (tile * tm + row) < n_valid
            m = jnp.where(valid, out, 0.0)
            psum = jnp.sum(m, axis=0, keepdims=True)                  # (1, Cout)
            psq = jnp.sum(m * out, axis=0, keepdims=True)             # (1, Cout)
            stat_ref[0, 0] = jnp.concatenate([psum, psq], axis=0)     # (2, Cout)

    return kernel


def _spade_conv_stage(x_tok, mean, istd, conv_w_t, conv_b, *,
                      style_tok=None, spade_w=None, gamma_c=None, beta_c=None,
                      skip_tok=None, emit_stats=False, n_valid, tm,
                      out_dtype, vmem_limit):
    B, Np, cin_p = x_tok.shape
    cout_p = conv_w_t.shape[-1]
    n_tiles = Np // tm
    spatial = style_tok is not None

    kernel = _make_stage_kernel(spatial_style=spatial,
                                with_skip=skip_tok is not None,
                                emit_stats=emit_stats, n_valid=n_valid, tm=tm)

    in_specs = [pl.BlockSpec((1, tm, cin_p), lambda i, b: (b, i, 0))]   # x tile
    args = [x_tok]
    if spatial:
        s_p = style_tok.shape[-1]
        in_specs.append(pl.BlockSpec((1, tm, s_p), lambda i, b: (b, i, 0)))
        args.append(style_tok)
    in_specs += [pl.BlockSpec((1, 1, cin_p), lambda i, b: (b, 0, 0)),   # per-batch mean
                 pl.BlockSpec((1, 1, cin_p), lambda i, b: (b, 0, 0))]   # per-batch 1/std
    args += [mean, istd]
    if spatial:
        ws_t, bs, wg_t, bg1, wb_t, bb = spade_w
        in_specs += [pl.BlockSpec(ws_t.shape, lambda i, b: (0, 0)),     # mlp_shared W^T
                     pl.BlockSpec(bs.shape, lambda i, b: (0, 0)),
                     pl.BlockSpec(wg_t.shape, lambda i, b: (0, 0)),     # mlp_gamma W^T
                     pl.BlockSpec(bg1.shape, lambda i, b: (0, 0)),      # gamma bias (+1 folded)
                     pl.BlockSpec(wb_t.shape, lambda i, b: (0, 0)),     # mlp_beta W^T
                     pl.BlockSpec(bb.shape, lambda i, b: (0, 0))]
        args += [ws_t, bs, wg_t, bg1, wb_t, bb]
    else:
        in_specs += [pl.BlockSpec((1, 1, cin_p), lambda i, b: (b, 0, 0)),  # gamma (const)
                     pl.BlockSpec((1, 1, cin_p), lambda i, b: (b, 0, 0))]  # beta  (const)
        args += [gamma_c, beta_c]
    in_specs += [pl.BlockSpec(conv_w_t.shape, lambda i, b: (0, 0)),     # conv W^T (SN'd)
                 pl.BlockSpec(conv_b.shape, lambda i, b: (0, 0))]
    args += [conv_w_t, conv_b]
    if skip_tok is not None:
        in_specs.append(pl.BlockSpec((1, tm, cout_p), lambda i, b: (b, i, 0)))
        args.append(skip_tok)

    out_specs = [pl.BlockSpec((1, tm, cout_p), lambda i, b: (b, i, 0))]
    out_shape = [jax.ShapeDtypeStruct((B, Np, cout_p), out_dtype)]
    if emit_stats:
        out_specs.append(pl.BlockSpec((1, 1, 2, cout_p), lambda i, b: (b, i, 0, 0)))
        out_shape.append(jax.ShapeDtypeStruct((B, n_tiles, 2, cout_p), jnp.float32))

    res = pl.pallas_call(
        kernel,
        out_shape=tuple(out_shape),
        grid_spec=pltpu.PrefetchScalarGridSpec(
            num_scalar_prefetch=0,
            grid=(n_tiles, B),                    # long token axis first (v7x megacore)
            in_specs=in_specs,
            out_specs=out_specs,
        ),
        compiler_params=pltpu.CompilerParams(
            dimension_semantics=("parallel", "parallel"),
            vmem_limit_bytes=int(vmem_limit)),
    )(*args)
    return res if emit_stats else res[0]


# ----------------------------------------------------------------------------- module
def _prep_spade_weights(p, c_pad, s_pad, hd_pad, wdt):
    ws_t = _pad_to(p["ws"].T, (s_pad, hd_pad)).astype(wdt)
    bs = _pad_to(p["bs"][None, :], (1, hd_pad)).astype(jnp.float32)
    wg_t = _pad_to(p["wg"].T, (hd_pad, c_pad)).astype(wdt)
    bg1 = _pad_to((p["bg"] + 1.0)[None, :], (1, c_pad)).astype(jnp.float32)   # fold "1 +"
    wb_t = _pad_to(p["wb"].T, (hd_pad, c_pad)).astype(wdt)
    bb = _pad_to(p["bb"][None, :], (1, c_pad)).astype(jnp.float32)
    return ws_t, bs, wg_t, bg1, wb_t, bb


def _const_style_modulation(style2, p):
    """gamma/beta for a per-batch constant style, computed once in f32."""
    hi = lax.Precision.HIGHEST
    actv = jax.nn.relu(jnp.dot(style2, p["ws"].T, precision=hi) + p["bs"])
    gamma = 1.0 + jnp.dot(actv, p["wg"].T, precision=hi) + p["bg"]
    beta = jnp.dot(actv, p["wb"].T, precision=hi) + p["bb"]
    return gamma, beta                         # (B, C) each


def spade_block(x, style, params, *, skip=False, tm=1024,
                compute_dtype=jnp.bfloat16, prenormalized=False):
    """SPADEBlock.forward (normalization='instance_norm', eval semantics).

    x: (B, Cin, H, W) NCHW.
    style: (B, 1, style_dim) (broadcast to every pixel, like the PyTorch .expand)
           or (B, style_dim, H, W) NCHW.
    compute_dtype: streaming/MXU dtype (bf16 default; f32 for bit-accurate checks).
    Returns (B, Cout, H, W) in x.dtype.
    """
    B, Cin, H, W = x.shape
    N = H * W
    out_dtype_final = x.dtype
    act_bytes = w_bytes = jnp.dtype(compute_dtype).itemsize

    w0 = params["conv0_w"] if prenormalized else _spectral_normalize(params["conv0_w"])
    w1 = params["conv1_w"] if prenormalized else _spectral_normalize(params["conv1_w"])
    b0, b1 = params["conv0_b"], params["conv1_b"]
    Cout = w0.shape[0]
    sp0, sp1 = params["spade0"], params["spade1"]
    Hd, S = sp0["ws"].shape
    spatial_style = style.ndim == 4
    use_skip = skip and (Cin == Cout)   # skip add only well-defined for matching channels

    # token-major layout: channels on lanes
    x_tok = jnp.transpose(x, (0, 2, 3, 1)).reshape(B, N, Cin).astype(jnp.float32)

    # lane-dense padding (multiples of 128): unmasked stores, MXU-aligned contractions
    # TODO(synk): for channel counts well below 128 an unpadded (masked-store) layout
    #             would cut DMA bytes; production SPADE channels are >=128 so keep it.
    Cin_p, Cout_p = _ru(Cin, LANE), _ru(Cout, LANE)
    S_p, Hd_p = _ru(S, LANE), _ru(Hd, LANE)

    budget, vmem_limit = _vmem_budget()
    tm0 = _pick_token_tile(N, act_bytes=act_bytes, w_bytes=w_bytes,
                           cin_p=Cin_p, cout_p=Cout_p, s_p=S_p, hd_p=Hd_p,
                           spatial_style=spatial_style, with_skip=False,
                           budget_bytes=budget, target=tm)
    tm1 = _pick_token_tile(N, act_bytes=act_bytes, w_bytes=w_bytes,
                           cin_p=Cout_p, cout_p=Cout_p, s_p=S_p, hd_p=Hd_p,
                           spatial_style=spatial_style, with_skip=use_skip,
                           budget_bytes=budget, target=tm)
    tm_eff = min(tm0, tm1)
    N_p = _ru(N, tm_eff)

    x_p = _pad_to(x_tok, (B, N_p, Cin_p)).astype(compute_dtype)

    if spatial_style:
        style_tok = jnp.transpose(style, (0, 2, 3, 1)).reshape(B, N, S).astype(jnp.float32)
        style_p = _pad_to(style_tok, (B, N_p, S_p)).astype(compute_dtype)
        spade0_w = _prep_spade_weights(sp0, Cin_p, S_p, Hd_p, compute_dtype)
        spade1_w = _prep_spade_weights(sp1, Cout_p, S_p, Hd_p, compute_dtype)
        gb0 = gb1 = (None, None)
    else:
        # Constant-per-batch style: hoist the whole SPADE MLP out of the kernel.
        style2 = style.reshape(B, S).astype(jnp.float32)
        g0, bt0 = _const_style_modulation(style2, sp0)      # (B, Cin)
        g1, bt1 = _const_style_modulation(style2, sp1)      # (B, Cout)
        gb0 = (_pad_to(g0[:, None, :], (B, 1, Cin_p)).astype(jnp.float32),
               _pad_to(bt0[:, None, :], (B, 1, Cin_p)).astype(jnp.float32))
        gb1 = (_pad_to(g1[:, None, :], (B, 1, Cout_p)).astype(jnp.float32),
               _pad_to(bt1[:, None, :], (B, 1, Cout_p)).astype(jnp.float32))
        style_p = None
        spade0_w = spade1_w = None

    # stage-0 instance-norm stats (f32, biased variance as nn.InstanceNorm2d)
    mean0 = jnp.mean(x_tok, axis=1, keepdims=True)
    istd0 = lax.rsqrt(jnp.var(x_tok, axis=1, keepdims=True) + _IN_EPS)
    mean0 = _pad_to(mean0, (B, 1, Cin_p)).astype(jnp.float32)
    istd0 = _pad_to(istd0, (B, 1, Cin_p)).astype(jnp.float32)

    w0_t = _pad_to(w0.T, (Cin_p, Cout_p)).astype(compute_dtype)
    b0_p = _pad_to(b0[None, :], (1, Cout_p)).astype(jnp.float32)
    w1_t = _pad_to(w1.T, (Cout_p, Cout_p)).astype(compute_dtype)
    b1_p = _pad_to(b1[None, :], (1, Cout_p)).astype(jnp.float32)

    # ---- stage 0: spade_0 -> LeakyReLU -> conv_0  (also emits partial stats of h)
    h, stats0 = _spade_conv_stage(
        x_p, mean0, istd0, w0_t, b0_p,
        style_tok=style_p, spade_w=spade0_w, gamma_c=gb0[0], beta_c=gb0[1],
        skip_tok=None, emit_stats=True, n_valid=N, tm=tm_eff,
        out_dtype=compute_dtype, vmem_limit=vmem_limit)

    # stage-1 instance-norm stats from the fused partial sums (no extra pass over h)
    tot = jnp.sum(stats0, axis=1)                        # (B, 2, Cout_p), f32
    mean1 = tot[:, 0, :] / N
    var1 = jnp.maximum(tot[:, 1, :] / N - mean1 * mean1, 0.0)
    istd1 = lax.rsqrt(var1 + _IN_EPS)
    mean1, istd1 = mean1[:, None, :], istd1[:, None, :]

    # ---- stage 1: spade_1 -> LeakyReLU -> conv_1 (+ optional skip), out in caller dtype
    out = _spade_conv_stage(
        h, mean1, istd1, w1_t, b1_p,
        style_tok=style_p, spade_w=spade1_w, gamma_c=gb1[0], beta_c=gb1[1],
        skip_tok=x_p if use_skip else None, emit_stats=False, n_valid=N,
        tm=tm_eff, out_dtype=out_dtype_final, vmem_limit=vmem_limit)

    out = out[:, :N, :Cout].reshape(B, H, W, Cout)
    return jnp.transpose(out, (0, 3, 1, 2))


# ----------------------------------------------------------------------------- params / reference
def init_params(key, in_dim, out_dim, style_dim, hidden_dim=_HIDDEN):
    ks = jax.random.split(key, 16)

    def conv(k, o, i):
        return jax.random.normal(k, (o, i), jnp.float32) * (1.0 / math.sqrt(i))

    def bias(k, o):
        return jax.random.normal(k, (o,), jnp.float32) * 0.1

    def spade(kw, c):
        k1, k2, k3, k4, k5, k6 = jax.random.split(kw, 6)
        return {"ws": conv(k1, hidden_dim, style_dim), "bs": bias(k4, hidden_dim),
                "wg": conv(k2, c, hidden_dim), "bg": bias(k5, c),
                "wb": conv(k3, c, hidden_dim), "bb": bias(k6, c)}

    return {
        "conv0_w": conv(ks[0], out_dim, in_dim), "conv0_b": bias(ks[1], out_dim),
        "conv1_w": conv(ks[2], out_dim, out_dim), "conv1_b": bias(ks[3], out_dim),
        "spade0": spade(ks[4], in_dim),
        "spade1": spade(ks[5], out_dim),
    }


def _reference(x, style, params, *, skip=False, prenormalized=False):
    """Pure-JAX f32 mirror of SPADEBlock.forward (instance_norm, eval mode)."""
    B, Cin, H, W = x.shape
    S = params["spade0"]["ws"].shape[1]
    if style.ndim < 4:
        style4 = jnp.broadcast_to(style.reshape(B, S, 1, 1), (B, S, H, W))
    else:
        style4 = style
    hi = lax.Precision.HIGHEST

    def conv1x1(t, w, b):
        return jnp.einsum("bchw,oc->bohw", t, w, precision=hi) + b[None, :, None, None]

    def instance_norm(t):
        mean = jnp.mean(t, axis=(2, 3), keepdims=True)
        var = jnp.var(t, axis=(2, 3), keepdims=True)
        return (t - mean) * lax.rsqrt(var + _IN_EPS)

    def spade(t, p):
        actv = jax.nn.relu(conv1x1(style4, p["ws"], p["bs"]))
        gamma = 1.0 + conv1x1(actv, p["wg"], p["bg"])
        beta = conv1x1(actv, p["wb"], p["bb"])
        return instance_norm(t) * gamma + beta

    def leaky(t):
        return jnp.where(t >= 0, t, _LRELU_SLOPE * t)

    w0 = params["conv0_w"] if prenormalized else _spectral_normalize(params["conv0_w"])
    w1 = params["conv1_w"] if prenormalized else _spectral_normalize(params["conv1_w"])
    x_orig = x
    h = conv1x1(leaky(spade(x, params["spade0"])), w0, params["conv0_b"])
    out = conv1x1(leaky(spade(h, params["spade1"])), w1, params["conv1_b"])
    if skip and out.shape[-1] == x_orig.shape[-1] and out.shape[1] == x_orig.shape[1]:
        out = out + x_orig
    return out


# ----------------------------------------------------------------------------- demo
if __name__ == "__main__":
    key = jax.random.PRNGKey(0)
    k_p, k_x, k_s, k_p2, k_x2, k_s2 = jax.random.split(key, 6)

    run = jax.jit(spade_block,
                  static_argnames=("skip", "tm", "compute_dtype", "prenormalized"))

    # test 1: per-batch constant style (3-D style), in_dim != out_dim, no skip (f32 exact)
    B, in_dim, out_dim, style_dim, H, W = 2, 4, 8, 32, 16, 16
    params = prepare_params(init_params(k_p, in_dim, out_dim, style_dim))
    x = jax.random.normal(k_x, (B, in_dim, H, W), jnp.float32)
    style = jax.random.normal(k_s, (B, 1, style_dim), jnp.float32)

    out = jax.block_until_ready(
        run(x, style, params, compute_dtype=jnp.float32, prenormalized=True))
    ref = _reference(x, style, params, prenormalized=True)
    assert out.shape == (B, out_dim, H, W)
    err = float(jnp.max(jnp.abs(out - ref)))
    assert jnp.allclose(out, ref, atol=5e-4, rtol=5e-4), f"test1 mismatch, max|err|={err}"

    # test 2: spatially-varying 4-D style, in_dim == out_dim, skip connection (f32 exact)
    B2, dim2, style_dim2, H2, W2 = 2, 4, 8, 8, 8
    params2 = prepare_params(init_params(k_p2, dim2, dim2, style_dim2))
    x2 = jax.random.normal(k_x2, (B2, dim2, H2, W2), jnp.float32)
    style2 = jax.random.normal(k_s2, (B2, style_dim2, H2, W2), jnp.float32)

    out2 = jax.block_until_ready(
        run(x2, style2, params2, skip=True, compute_dtype=jnp.float32, prenormalized=True))
    ref2 = _reference(x2, style2, params2, skip=True, prenormalized=True)
    assert out2.shape == (B2, dim2, H2, W2)
    err2 = float(jnp.max(jnp.abs(out2 - ref2)))
    assert jnp.allclose(out2, ref2, atol=5e-4, rtol=5e-4), f"test2 mismatch, max|err|={err2}"

    # test 3: default serving path (bf16 streaming, f32 accumulation), loose tolerance
    out3 = jax.block_until_ready(run(x, style, params, prenormalized=True))
    err3 = float(jnp.max(jnp.abs(out3.astype(jnp.float32) - ref)))
    assert err3 < 1e-1, f"test3 (bf16) mismatch, max|err|={err3}"

    print("KERNEL_OK")
</pallas_src>

<mosaic_0001>
module attributes {stable_mosaic.version = 11 : i64} {
  func.func @kernel(%arg0: i32, %arg1: i32, %arg2: memref<1x256x128xf32, #tpu.memory_space<vmem>>, %arg3: memref<1x1x128xf32, #tpu.memory_space<vmem>>, %arg4: memref<1x1x128xf32, #tpu.memory_space<vmem>>, %arg5: memref<1x1x128xf32, #tpu.memory_space<vmem>>, %arg6: memref<1x1x128xf32, #tpu.memory_space<vmem>>, %arg7: memref<128x128xf32, #tpu.memory_space<vmem>>, %arg8: memref<1x128xf32, #tpu.memory_space<vmem>>, %arg9: memref<1x256x128xf32, #tpu.memory_space<vmem>>, %arg10: memref<1x1x2x128xf32, #tpu.memory_space<vmem>>) attributes {dimension_semantics = [#tpu.dimension_semantics<parallel>, #tpu.dimension_semantics<parallel>], iteration_bounds = array<i64: 1, 2>, scalar_prefetch = 0 : i64, scratch_operands = 0 : i64, tpu.core_type = #tpu.core_type<tc>, window_params = [{transform_indices = @transform_0, window_bounds = array<i64: 1, 256, 128>}, {transform_indices = @transform_1, window_bounds = array<i64: 1, 1, 128>}, {transform_indices = @transform_2, window_bounds = array<i64: 1, 1, 128>}, {transform_indices = @transform_3, window_bounds = array<i64: 1, 1, 128>}, {transform_indices = @transform_4, window_bounds = array<i64: 1, 1, 128>}, {pipeline_mode = #tpu.pipeline_mode<synchronous>, transform_indices = @transform_5, window_bounds = array<i64: 128, 128>}, {pipeline_mode = #tpu.pipeline_mode<synchronous>, transform_indices = @transform_6, window_bounds = array<i64: 1, 128>}, {transform_indices = @transform_7, window_bounds = array<i64: 1, 256, 128>}, {transform_indices = @transform_8, window_bounds = array<i64: 1, 1, 2, 128>}]} {
    %c0 = arith.constant 0 : index
    %c0_0 = arith.constant 0 : index
    %c0_1 = arith.constant 0 : index
    %0 = vector.load %arg5[%c0, %c0_0, %c0_1] : memref<1x1x128xf32, #tpu.memory_space<vmem>>, vector<1x1x128xf32>
    %1 = vector.shape_cast %0 : vector<1x1x128xf32> to vector<1x128xf32>
    %c0_2 = arith.constant 0 : index
    %c0_3 = arith.constant 0 : index
    %c0_4 = arith.constant 0 : index
    %2 = vector.load %arg6[%c0_2, %c0_3, %c0_4] : memref<1x1x128xf32, #tpu.memory_space<vmem>>, vector<1x1x128xf32>
    %3 = vector.shape_cast %2 : vector<1x1x128xf32> to vector<1x128xf32>
    %c0_5 = arith.constant 0 : index
    %c0_6 = arith.constant 0 : index
    %c0_7 = arith.constant 0 : index
    %4 = vector.load %arg2[%c0_5, %c0_6, %c0_7] : memref<1x256x128xf32, #tpu.memory_space<vmem>>, vector<1x256x128xf32>
    %5 = vector.shape_cast %4 : vector<1x256x128xf32> to vector<256x128xf32>
    %c0_8 = arith.constant 0 : index
    %c0_9 = arith.constant 0 : index
    %c0_10 = arith.constant 0 : index
    %6 = vector.load %arg3[%c0_8, %c0_9, %c0_10] : memref<1x1x128xf32, #tpu.memory_space<vmem>>, vector<1x1x128xf32>
    %7 = vector.shape_cast %6 : vector<1x1x128xf32> to vector<1x128xf32>
    %8 = vector.broadcast %7 : vector<1x128xf32> to vector<256x128xf32>
    %9 = arith.subf %5, %8 : vector<256x128xf32>
    %c0_11 = arith.constant 0 : index
    %c0_12 = arith.constant 0 : index
    %c0_13 = arith.constant 0 : index
    %10 = vector.load %arg4[%c0_11, %c0_12, %c0_13] : memref<1x1x128xf32, #tpu.memory_space<vmem>>, vector<1x1x128xf32>
    %11 = vector.shape_cast %10 : vector<1x1x128xf32> to vector<1x128xf32>
    %12 = vector.broadcast %11 : vector<1x128xf32> to vector<256x128xf32>
    %13 = arith.mulf %9, %12 : vector<256x128xf32>
    %14 = vector.broadcast %1 : vector<1x128xf32> to vector<256x128xf32>
    %15 = arith.mulf %13, %14 : vector<256x128xf32>
    %16 = vector.broadcast %3 : vector<1x128xf32> to vector<256x128xf32>
    %17 = arith.addf %15, %16 : vector<256x128xf32>
    %cst = arith.constant 0.000000e+00 : f32
    %18 = vector.broadcast %cst : f32 to vector<256x128xf32>
    %19 = arith.cmpf oge, %17, %18 : vector<256x128xf32>
    %cst_14 = arith.constant 2.000000e-01 : f32
    %20 = vector.broadcast %cst_14 : f32 to vector<256x128xf32>
    %21 = arith.mulf %20, %17 : vector<256x128xf32>
    %22 = arith.select %19, %17, %21 : vector<256x128xi1>, vector<256x128xf32>
    %c0_15 = arith.constant 0 : index
    %c0_16 = arith.constant 0 : index
    %23 = vector.load %arg7[%c0_15, %c0_16] : memref<128x128xf32, #tpu.memory_space<vmem>>, vector<128x128xf32>
    %cst_17 = arith.constant dense<0.000000e+00> : vector<256x128xf32>
    %24 = tpu.matmul %22, %23, %cst_17 {dimension_numbers = #tpu.dot_dimension_numbers<[1], [0], [0], [1], [0, 0, 1, 1], [], []>} : vector<256x128xf32>, vector<128x128xf32>, vector<256x128xf32> -> vector<256x128xf32>
    %c0_18 = arith.constant 0 : index
    %c0_19 = arith.constant 0 : index
    %25 = vector.load %arg8[%c0_18, %c0_19] : memref<1x128xf32, #tpu.memory_space<vmem>>, vector<1x128xf32>
    %26 = vector.broadcast %25 : vector<1x128xf32> to vector<256x128xf32>
    %27 = arith.addf %24, %26 : vector<256x128xf32>
    %c0_20 = arith.constant 0 : index
    %c0_21 = arith.constant 0 : index
    %c0_22 = arith.constant 0 : index
    %28 = vector.load %arg9[%c0_20, %c0_21, %c0_22] : memref<1x256x128xf32, #tpu.memory_space<vmem>>, vector<1x256x128xf32>
    %29 = vector.shape_cast %28 : vector<1x256x128xf32> to vector<256x128xf32>
    %30 = vector.shape_cast %27 : vector<256x128xf32> to vector<1x256x128xf32>
    tpu.vector_store %arg9[%c0_20, %c0_21, %c0_22], %30 {strides = array<i32>} : memref<1x256x128xf32, #tpu.memory_space<vmem>>, vector<1x256x128xf32>,
    %31 = tpu.iota {dimensions = array<i32: 0>} : vector<256x1xi32>
    %c256_i32 = arith.constant 256 : i32
    %32 = arith.muli %arg0, %c256_i32 : i32
    %33 = vector.broadcast %32 : i32 to vector<256x1xi32>
    %34 = arith.addi %33, %31 : vector<256x1xi32>
    %c256_i32_23 = arith.constant 256 : i32
    %35 = vector.broadcast %c256_i32_23 : i32 to vector<256x1xi32>
    %36 = arith.cmpi slt, %34, %35 : vector<256x1xi32>
    %cst_24 = arith.constant 0.000000e+00 : f32
    %37 = vector.shape_cast %36 : vector<256x1xi1> to vector<256x1xi1>
    %38 = vector.broadcast %37 : vector<256x1xi1> to vector<256x128xi1>
    %39 = vector.broadcast %cst_24 : f32 to vector<256x128xf32>
    %40 = arith.select %38, %27, %39 : vector<256x128xi1>, vector<256x128xf32>
    %cst_25 = arith.constant dense<0.000000e+00> : vector<128xf32>
    %41 = vector.multi_reduction <add>, %40, %cst_25 [0] : vector<256x128xf32> to vector<128xf32>
    %42 = vector.shape_cast %41 : vector<128xf32> to vector<1x128xf32>
    %43 = arith.mulf %40, %27 : vector<256x128xf32>
    %cst_26 = arith.constant dense<0.000000e+00> : vector<128xf32>
    %44 = vector.multi_reduction <add>, %43, %cst_26 [0] : vector<256x128xf32> to vector<128xf32>
    %45 = vector.shape_cast %44 : vector<128xf32> to vector<1x128xf32>
    %46 = tpu.concatenate %42, %45 in 0 : vector<1x128xf32>, vector<1x128xf32> -> vector<2x128xf32>
    %c0_27 = arith.constant 0 : index
    %c0_28 = arith.constant 0 : index
    %c0_29 = arith.constant 0 : index
    %c0_30 = arith.constant 0 : index
    %47 = vector.load %arg10[%c0_27, %c0_28, %c0_29, %c0_30] : memref<1x1x2x128xf32, #tpu.memory_space<vmem>>, vector<1x1x2x128xf32>
    %48 = vector.shape_cast %47 : vector<1x1x2x128xf32> to vector<2x128xf32>
    %49 = vector.shape_cast %46 : vector<2x128xf32> to vector<1x1x2x128xf32>
    tpu.vector_store %arg10[%c0_27, %c0_28, %c0_29, %c0_30], %49 {strides = array<i32>} : memref<1x1x2x128xf32, #tpu.memory_space<vmem>>, vector<1x1x2x128xf32>,
    return
  }
  func.func @transform_0(%arg0: i32, %arg1: i32) -> (i32, i32, i32) {
    %c0_i32 = arith.constant 0 : i32
    %c0_i32_0 = arith.constant 0 : i32
    return %arg1, %arg0, %c0_i32 : i32, i32, i32
  }
  func.func @transform_1(%arg0: i32, %arg1: i32) -> (i32, i32, i32) {
    %c0_i32 = arith.constant 0 : i32
    %c0_i32_0 = arith.constant 0 : i32
    %c0_i32_1 = arith.constant 0 : i32
    return %arg1, %c0_i32, %c0_i32_0 : i32, i32, i32
  }
  func.func @transform_2(%arg0: i32, %arg1: i32) -> (i32, i32, i32) {
    %c0_i32 = arith.constant 0 : i32
    %c0_i32_0 = arith.constant 0 : i32
    %c0_i32_1 = arith.constant 0 : i32
    return %arg1, %c0_i32, %c0_i32_0 : i32, i32, i32
  }
  func.func @transform_3(%arg0: i32, %arg1: i32) -> (i32, i32, i32) {
    %c0_i32 = arith.constant 0 : i32
    %c0_i32_0 = arith.constant 0 : i32
    %c0_i32_1 = arith.constant 0 : i32
    return %arg1, %c0_i32, %c0_i32_0 : i32, i32, i32
  }
  func.func @transform_4(%arg0: i32, %arg1: i32) -> (i32, i32, i32) {
    %c0_i32 = arith.constant 0 : i32
    %c0_i32_0 = arith.constant 0 : i32
    %c0_i32_1 = arith.constant 0 : i32
    return %arg1, %c0_i32, %c0_i32_0 : i32, i32, i32
  }
  func.func @transform_5(%arg0: i32, %arg1: i32) -> (i32, i32) {
    %c0_i32 = arith.constant 0 : i32
    %c0_i32_0 = arith.constant 0 : i32
    %c0_i32_1 = arith.constant 0 : i32
    return %c0_i32, %c0_i32_0 : i32, i32
  }
  func.func @transform_6(%arg0: i32, %arg1: i32) -> (i32, i32) {
    %c0_i32 = arith.constant 0 : i32
    %c0_i32_0 = arith.constant 0 : i32
    %c0_i32_1 = arith.constant 0 : i32
    return %c0_i32, %c0_i32_0 : i32, i32
  }
  func.func @transform_7(%arg0: i32, %arg1: i32) -> (i32, i32, i32) {
    %c0_i32 = arith.constant 0 : i32
    %c0_i32_0 = arith.constant 0 : i32
    return %arg1, %arg0, %c0_i32 : i32, i32, i32
  }
  func.func @transform_8(%arg0: i32, %arg1: i32) -> (i32, i32, i32, i32) {
    %c0_i32 = arith.constant 0 : i32
    %c0_i32_0 = arith.constant 0 : i32
    %c0_i32_1 = arith.constant 0 : i32
    return %arg1, %arg0, %c0_i32, %c0_i32_0 : i32, i32, i32, i32
  }
}

module attributes {stable_mosaic.version = 11 : i64} {
  func.func @kernel(%arg0: i32, %arg1: i32, %arg2: memref<1x256x128xf32, #tpu.memory_space<vmem>>, %arg3: memref<1x1x128xf32, #tpu.memory_space<vmem>>, %arg4: memref<1x1x128xf32, #tpu.memory_space<vmem>>, %arg5: memref<1x1x128xf32, #tpu.memory_space<vmem>>, %arg6: memref<1x1x128xf32, #tpu.memory_space<vmem>>, %arg7: memref<128x128xf32, #tpu.memory_space<vmem>>, %arg8: memref<1x128xf32, #tpu.memory_space<vmem>>, %arg9: memref<1x256x128xf32, #tpu.memory_space<vmem>>) attributes {dimension_semantics = [#tpu.dimension_semantics<parallel>, #tpu.dimension_semantics<parallel>], iteration_bounds = array<i64: 1, 2>, scalar_prefetch = 0 : i64, scratch_operands = 0 : i64, tpu.core_type = #tpu.core_type<tc>, window_params = [{transform_indices = @transform_0, window_bounds = array<i64: 1, 256, 128>}, {transform_indices = @transform_1, window_bounds = array<i64: 1, 1, 128>}, {transform_indices = @transform_2, window_bounds = array<i64: 1, 1, 128>}, {transform_indices = @transform_3, window_bounds = array<i64: 1, 1, 128>}, {transform_indices = @transform_4, window_bounds = array<i64: 1, 1, 128>}, {pipeline_mode = #tpu.pipeline_mode<synchronous>, transform_indices = @transform_5, window_bounds = array<i64: 128, 128>}, {pipeline_mode = #tpu.pipeline_mode<synchronous>, transform_indices = @transform_6, window_bounds = array<i64: 1, 128>}, {transform_indices = @transform_7, window_bounds = array<i64: 1, 256, 128>}]} {
    %c0 = arith.constant 0 : index
    %c0_0 = arith.constant 0 : index
    %c0_1 = arith.constant 0 : index
    %0 = vector.load %arg5[%c0, %c0_0, %c0_1] : memref<1x1x128xf32, #tpu.memory_space<vmem>>, vector<1x1x128xf32>
    %1 = vector.shape_cast %0 : vector<1x1x128xf32> to vector<1x128xf32>
    %c0_2 = arith.constant 0 : index
    %c0_3 = arith.constant 0 : index
    %c0_4 = arith.constant 0 : index
    %2 = vector.load %arg6[%c0_2, %c0_3, %c0_4] : memref<1x1x128xf32, #tpu.memory_space<vmem>>, vector<1x1x128xf32>
    %3 = vector.shape_cast %2 : vector<1x1x128xf32> to vector<1x128xf32>
    %c0_5 = arith.constant 0 : index
    %c0_6 = arith.constant 0 : index
    %c0_7 = arith.constant 0 : index
    %4 = vector.load %arg2[%c0_5, %c0_6, %c0_7] : memref<1x256x128xf32, #tpu.memory_space<vmem>>, vector<1x256x128xf32>
    %5 = vector.shape_cast %4 : vector<1x256x128xf32> to vector<256x128xf32>
    %c0_8 = arith.constant 0 : index
    %c0_9 = arith.constant 0 : index
    %c0_10 = arith.constant 0 : index
    %6 = vector.load %arg3[%c0_8, %c0_9, %c0_10] : memref<1x1x128xf32, #tpu.memory_space<vmem>>, vector<1x1x128xf32>
    %7 = vector.shape_cast %6 : vector<1x1x128xf32> to vector<1x128xf32>
    %8 = vector.broadcast %7 : vector<1x128xf32> to vector<256x128xf32>
    %9 = arith.subf %5, %8 : vector<256x128xf32>
    %c0_11 = arith.constant 0 : index
    %c0_12 = arith.constant 0 : index
    %c0_13 = arith.constant 0 : index
    %10 = vector.load %arg4[%c0_11, %c0_12, %c0_13] : memref<1x1x128xf32, #tpu.memory_space<vmem>>, vector<1x1x128xf32>
    %11 = vector.shape_cast %10 : vector<1x1x128xf32> to vector<1x128xf32>
    %12 = vector.broadcast %11 : vector<1x128xf32> to vector<256x128xf32>
    %13 = arith.mulf %9, %12 : vector<256x128xf32>
    %14 = vector.broadcast %1 : vector<1x128xf32> to vector<256x128xf32>
    %15 = arith.mulf %13, %14 : vector<256x128xf32>
    %16 = vector.broadcast %3 : vector<1x128xf32> to vector<256x128xf32>
    %17 = arith.addf %15, %16 : vector<256x128xf32>
    %cst = arith.constant 0.000000e+00 : f32
    %18 = vector.broadcast %cst : f32 to vector<256x128xf32>
    %19 = arith.cmpf oge, %17, %18 : vector<256x128xf32>
    %cst_14 = arith.constant 2.000000e-01 : f32
    %20 = vector.broadcast %cst_14 : f32 to vector<256x128xf32>
    %21 = arith.mulf %20, %17 : vector<256x128xf32>
    %22 = arith.select %19, %17, %21 : vector<256x128xi1>, vector<256x128xf32>
    %c0_15 = arith.constant 0 : index
    %c0_16 = arith.constant 0 : index
    %23 = vector.load %arg7[%c0_15, %c0_16] : memref<128x128xf32, #tpu.memory_space<vmem>>, vector<128x128xf32>
    %cst_17 = arith.constant dense<0.000000e+00> : vector<256x128xf32>
    %24 = tpu.matmul %22, %23, %cst_17 {dimension_numbers = #tpu.dot_dimension_numbers<[1], [0], [0], [1], [0, 0, 1, 1], [], []>} : vector<256x128xf32>, vector<128x128xf32>, vector<256x128xf32> -> vector<256x128xf32>
    %c0_18 = arith.constant 0 : index
    %c0_19 = arith.constant 0 : index
    %25 = vector.load %arg8[%c0_18, %c0_19] : memref<1x128xf32, #tpu.memory_space<vmem>>, vector<1x128xf32>
    %26 = vector.broadcast %25 : vector<1x128xf32> to vector<256x128xf32>
    %27 = arith.addf %24, %26 : vector<256x128xf32>
    %c0_20 = arith.constant 0 : index
    %c0_21 = arith.constant 0 : index
    %c0_22 = arith.constant 0 : index
    %28 = vector.load %arg9[%c0_20, %c0_21, %c0_22] : memref<1x256x128xf32, #tpu.memory_space<vmem>>, vector<1x256x128xf32>
    %29 = vector.shape_cast %28 : vector<1x256x128xf32> to vector<256x128xf32>
    %30 = vector.shape_cast %27 : vector<256x128xf32> to vector<1x256x128xf32>
    tpu.vector_store %arg9[%c0_20, %c0_21, %c0_22], %30 {strides = array<i32>} : memref<1x256x128xf32, #tpu.memory_space<vmem>>, vector<1x256x128xf32>,
    return
  }
  func.func @transform_0(%arg0: i32, %arg1: i32) -> (i32, i32, i32) {
    %c0_i32 = arith.constant 0 : i32
    %c0_i32_0 = arith.constant 0 : i32
    return %arg1, %arg0, %c0_i32 : i32, i32, i32
  }
  func.func @transform_1(%arg0: i32, %arg1: i32) -> (i32, i32, i32) {
    %c0_i32 = arith.constant 0 : i32
    %c0_i32_0 = arith.constant 0 : i32
    %c0_i32_1 = arith.constant 0 : i32
    return %arg1, %c0_i32, %c0_i32_0 : i32, i32, i32
  }
  func.func @transform_2(%arg0: i32, %arg1: i32) -> (i32, i32, i32) {
    %c0_i32 = arith.constant 0 : i32
    %c0_i32_0 = arith.constant 0 : i32
    %c0_i32_1 = arith.constant 0 : i32
    return %arg1, %c0_i32, %c0_i32_0 : i32, i32, i32
  }
  func.func @transform_3(%arg0: i32, %arg1: i32) -> (i32, i32, i32) {
    %c0_i32 = arith.constant 0 : i32
    %c0_i32_0 = arith.constant 0 : i32
    %c0_i32_1 = arith.constant 0 : i32
    return %arg1, %c0_i32, %c0_i32_0 : i32, i32, i32
  }
  func.func @transform_4(%arg0: i32, %arg1: i32) -> (i32, i32, i32) {
    %c0_i32 = arith.constant 0 : i32
    %c0_i32_0 = arith.constant 0 : i32
    %c0_i32_1 = arith.constant 0 : i32
    return %arg1, %c0_i32, %c0_i32_0 : i32, i32, i32
  }
  func.func @transform_5(%arg0: i32, %arg1: i32) -> (i32, i32) {
    %c0_i32 = arith.constant 0 : i32
    %c0_i32_0 = arith.constant 0 : i32
    %c0_i32_1 = arith.constant 0 : i32
    return %c0_i32, %c0_i32_0 : i32, i32
  }
  func.func @transform_6(%arg0: i32, %arg1: i32) -> (i32, i32) {
    %c0_i32 = arith.constant 0 : i32
    %c0_i32_0 = arith.constant 0 : i32
    %c0_i32_1 = arith.constant 0 : i32
    return %c0_i32, %c0_i32_0 : i32, i32
  }
  func.func @transform_7(%arg0: i32, %arg1: i32) -> (i32, i32, i32) {
    %c0_i32 = arith.constant 0 : i32
    %c0_i32_0 = arith.constant 0 : i32
    return %arg1, %arg0, %c0_i32 : i32, i32, i32
  }
}

</mosaic_0001>

<llo_original>
// kernel: spade_block.3
$region0: #{spade_block.3}
  #allocation0 [shape = 'u32[]', space=smem, size = 0x4, offset = 0x4, fixed_abs, tag = 'smem constant byte address 0x4 - core index']
  #allocation1 [shape = 'u32[144,128]{1,0:T(1,128)}', space=vmem, size = 0x12000, scoped, tag = 'internal scratch']
  %s0 = inlined_call_operand.vmem [shape: f32[2,256,128], index: 0, kind: input, shape index: {}]
  %s1 = inlined_call_operand.vmem [shape: f32[2,1,128], index: 1, kind: input, shape index: {}]
  %s2 = inlined_call_operand.vmem [shape: f32[2,1,128], index: 2, kind: input, shape index: {}]
  %s3 = inlined_call_operand.vmem [shape: f32[2,1,128], index: 3, kind: input, shape index: {}]
  %s4 = inlined_call_operand.vmem [shape: f32[2,1,128], index: 4, kind: input, shape index: {}]
  %s5 = inlined_call_operand.vmem [shape: f32[128,128], index: 5, kind: input, shape index: {}]
  %s6 = inlined_call_operand.vmem [shape: f32[1,128], index: 6, kind: input, shape index: {}]
  %s7 = inlined_call_operand.vmem [shape: f32[2,256,128], index: 7, kind: output, shape index: {}]
  %s8 = sld [smem:[#allocation0]]
  $region61: #{spade_block.3} parent=0
    _
  %s10 = ssub.s32 1, %s8
  %s11 = scalar_select 0, %s10, %s8
  loop: start=0, step=1, limit=4
  $region2: #{spade_block.3} parent=0 // loop_pre_header
    _
  $region3: #{spade_block.3} parent=0 // loop_header
    %s13 = sphi 0, %s17
    %p14 = scmp.ge.s32.totalorder %s13, 4
    %s20 = sphi 0, %s32
    %s21 = sphi 0, %s28
    %s22 = sphi 0, %s20
    %s23 = sphi 0, %s21
    %s24 = sphi 0, %s22
    %s25 = sphi 0, %s23
    %s37 = sphi 0, %s39
    %s40 = sphi 0, %s37
    %s41 = sphi 0, %s40
    %s57 = sphi 0, %s41
    %s63 = sphi 0, %s65
    %s66 = sphi 0, %s63
    %s67 = sphi 0, %s66
    %s83 = sphi 0, %s67
    %s89 = sphi 0, %s91
    %s92 = sphi 0, %s89
    %s93 = sphi 0, %s92
    %s109 = sphi 0, %s93
    %s115 = sphi 0, %s117
    %s118 = sphi 0, %s115
    %s119 = sphi 0, %s118
    %s135 = sphi 0, %s119
    %s141 = sphi 0, %s143
    %s144 = sphi 0, %s141
    %s145 = sphi 0, %s144
    %s161 = sphi 0, %s145
    %s165 = sphi 0, %s165
    %s167 = sphi 0, %s165
    %s168 = sphi 0, %s167
    %s182 = sphi 0, %s168
    %s186 = sphi 0, %s186
    %s188 = sphi 0, %s186
    %s189 = sphi 0, %s188
    %s203 = sphi 0, %s189
    %s211 = sphi 0, %s213
    %s214 = sphi 0, %s211
    %s215 = sphi 0, %s214
    %s231 = sphi 0, %s215
  $region4: #{spade_block.3} parent=0 // loop_header_branch
    %16 = sbr.rel (%p14) target = $region8
  $region5: #{spade_block.3} parent=0 // loop_body
    %s18 = ssub.s32 %s13, 1
    %s19 = ssub.s32 %s13, 2
    %s26 = sadd.s32 1, %s21
    %p27 = scmp.ge.s32.totalorder %s26, 2
    %s28 = scalar_select %p27, 0, %s26
    %s29 = sadd.s32 1, %s20
    %s30 = scalar_select %p27, %s29, %s20
    %p31 = scmp.ge.s32.totalorder %s30, 1
    %s32 = scalar_select %p31, 0, %s30
    %s33 = ssub.s32 %s21, %s28
    %s34 = ssub.s32 %s20, %s32
    %s35 = sor.u32 %s33, %s34
    %p36 = scmp.eq.s32.totalorder %s35, 0
    %s38 = sadd.s32 %s37, 1
    %s39 = scalar_select %p36, %s37, %s38
    %p42 = pneg %p36
    %p43 = scmp.eq.s32.totalorder %s13, 1
    %p44 = por %p42, %p43
    %p45 = scmp.ne.s32.totalorder %s37, %s40
    %p46 = scmp.eq.s32.totalorder %s13, 0
    %p47 = por %p45, %p46
    %p48 = scmp.ne.s32.totalorder %s37, %s40
    %p49 = scmp.eq.s32.totalorder %s18, 1
    %p50 = por %p48, %p49
    %p51 = scmp.ne.s32.totalorder %s40, %s41
    %p52 = scmp.eq.s32.totalorder %s18, 0
    %p53 = por %p51, %p52
    %p54 = scmp.ne.s32.totalorder %s40, %s41
    %p55 = scmp.eq.s32.totalorder %s19, 1
    %p56 = por %p54, %p55
    %p58 = scmp.ne.s32.totalorder %s41, %s57
    %p59 = scmp.eq.s32.totalorder %s19, 0
    %p60 = por %p58, %p59
    %s61 = ssub.s32 %s21, %s28
    %p62 = scmp.eq.s32.totalorder %s61, 0
    %s64 = sadd.s32 %s63, 1
    %s65 = scalar_select %p62, %s63, %s64
    %p68 = pneg %p62
    %p69 = scmp.eq.s32.totalorder %s13, 1
    %p70 = por %p68, %p69
    %p71 = scmp.ne.s32.totalorder %s63, %s66
    %p72 = scmp.eq.s32.totalorder %s13, 0
    %p73 = por %p71, %p72
    %p74 = scmp.ne.s32.totalorder %s63, %s66
    %p75 = scmp.eq.s32.totalorder %s18, 1
    %p76 = por %p74, %p75
    %p77 = scmp.ne.s32.totalorder %s66, %s67
    %p78 = scmp.eq.s32.totalorder %s18, 0
    %p79 = por %p77, %p78
    %p80 = scmp.ne.s32.totalorder %s66, %s67
    %p81 = scmp.eq.s32.totalorder %s19, 1
    %p82 = por %p80, %p81
    %p84 = scmp.ne.s32.totalorder %s67, %s83
    %p85 = scmp.eq.s32.totalorder %s19, 0
    %p86 = por %p84, %p85
    %s87 = ssub.s32 %s21, %s28
    %p88 = scmp.eq.s32.totalorder %s87, 0
    %s90 = sadd.s32 %s89, 1
    %s91 = scalar_select %p88, %s89, %s90
    %p94 = pneg %p88
    %p95 = scmp.eq.s32.totalorder %s13, 1
    %p96 = por %p94, %p95
    %p97 = scmp.ne.s32.totalorder %s89, %s92
    %p98 = scmp.eq.s32.totalorder %s13, 0
    %p99 = por %p97, %p98
    %p100 = scmp.ne.s32.totalorder %s89, %s92
    %p101 = scmp.eq.s32.totalorder %s18, 1
    %p102 = por %p100, %p101
    %p103 = scmp.ne.s32.totalorder %s92, %s93
    %p104 = scmp.eq.s32.totalorder %s18, 0
    %p105 = por %p103, %p104
    %p106 = scmp.ne.s32.totalorder %s92, %s93
    %p107 = scmp.eq.s32.totalorder %s19, 1
    %p108 = por %p106, %p107
    %p110 = scmp.ne.s32.totalorder %s93, %s109
    %p111 = scmp.eq.s32.totalorder %s19, 0
    %p112 = por %p110, %p111
    %s113 = ssub.s32 %s21, %s28
    %p114 = scmp.eq.s32.totalorder %s113, 0
    %s116 = sadd.s32 %s115, 1
    %s117 = scalar_select %p114, %s115, %s116
    %p120 = pneg %p114
    %p121 = scmp.eq.s32.totalorder %s13, 1
    %p122 = por %p120, %p121
    %p123 = scmp.ne.s32.totalorder %s115, %s118
    %p124 = scmp.eq.s32.totalorder %s13, 0
    %p125 = por %p123, %p124
    %p126 = scmp.ne.s32.totalorder %s115, %s118
    %p127 = scmp.eq.s32.totalorder %s18, 1
    %p128 = por %p126, %p127
    %p129 = scmp.ne.s32.totalorder %s118, %s119
    %p130 = scmp.eq.s32.totalorder %s18, 0
    %p131 = por %p129, %p130
    %p132 = scmp.ne.s32.totalorder %s118, %s119
    %p133 = scmp.eq.s32.totalorder %s19, 1
    %p134 = por %p132, %p133
    %p136 = scmp.ne.s32.totalorder %s119, %s135
    %p137 = scmp.eq.s32.totalorder %s19, 0
    %p138 = por %p136, %p137
    %s139 = ssub.s32 %s21, %s28
    %p140 = scmp.eq.s32.totalorder %s139, 0
    %s142 = sadd.s32 %s141, 1
    %s143 = scalar_select %p140, %s141, %s142
    %p146 = pneg %p140
    %p147 = scmp.eq.s32.totalorder %s13, 1
    %p148 = por %p146, %p147
    %p149 = scmp.ne.s32.totalorder %s141, %s144
    %p150 = scmp.eq.s32.totalorder %s13, 0
    %p151 = por %p149, %p150
    %p152 = scmp.ne.s32.totalorder %s141, %s144
    %p153 = scmp.eq.s32.totalorder %s18, 1
    %p154 = por %p152, %p153
    %p155 = scmp.ne.s32.totalorder %s144, %s145
    %p156 = scmp.eq.s32.totalorder %s18, 0
    %p157 = por %p155, %p156
    %p158 = scmp.ne.s32.totalorder %s144, %s145
    %p159 = scmp.eq.s32.totalorder %s19, 1
    %p160 = por %p158, %p159
    %p162 = scmp.ne.s32.totalorder %s145, %s161
    %p163 = scmp.eq.s32.totalorder %s19, 0
    %p164 = por %p162, %p163
    %s166 = sadd.s32 %s165, 1
    %p169 = scmp.eq.s32.totalorder %s13, 1
    %p170 = scmp.ne.s32.totalorder %s165, %s167
    %p171 = scmp.eq.s32.totalorder %s13, 0
    %p172 = por %p170, %p171
    %p173 = scmp.ne.s32.totalorder %s165, %s167
    %p174 = scmp.eq.s32.totalorder %s18, 1
    %p175 = por %p173, %p174
    %p176 = scmp.ne.s32.totalorder %s167, %s168
    %p177 = scmp.eq.s32.totalorder %s18, 0
    %p178 = por %p176, %p177
    %p179 = scmp.ne.s32.totalorder %s167, %s168
    %p180 = scmp.eq.s32.totalorder %s19, 1
    %p181 = por %p179, %p180
    %p183 = scmp.ne.s32.totalorder %s168, %s182
    %p184 = scmp.eq.s32.totalorder %s19, 0
    %p185 = por %p183, %p184
    %s187 = sadd.s32 %s186, 1
    %p190 = scmp.eq.s32.totalorder %s13, 1
    %p191 = scmp.ne.s32.totalorder %s186, %s188
    %p192 = scmp.eq.s32.totalorder %s13, 0
    %p193 = por %p191, %p192
    %p194 = scmp.ne.s32.totalorder %s186, %s188
    %p195 = scmp.eq.s32.totalorder %s18, 1
    %p196 = por %p194, %p195
    %p197 = scmp.ne.s32.totalorder %s188, %s189
    %p198 = scmp.eq.s32.totalorder %s18, 0
    %p199 = por %p197, %p198
    %p200 = scmp.ne.s32.totalorder %s188, %s189
    %p201 = scmp.eq.s32.totalorder %s19, 1
    %p202 = por %p200, %p201
    %p204 = scmp.ne.s32.totalorder %s189, %s203
    %p205 = scmp.eq.s32.totalorder %s19, 0
    %p206 = por %p204, %p205
    %s207 = ssub.s32 %s21, %s28
    %s208 = ssub.s32 %s20, %s32
    %s209 = sor.u32 %s207, %s208
    %p210 = scmp.eq.s32.totalorder %s209, 0
    %s212 = sadd.s32 %s211, 1
    %s213 = scalar_select %p210, %s211, %s212
    %p216 = pneg %p210
    %p217 = scmp.eq.s32.totalorder %s13, 1
    %p218 = por %p216, %p217
    %p219 = scmp.ne.s32.totalorder %s211, %s214
    %p220 = scmp.eq.s32.totalorder %s13, 0
    %p221 = por %p219, %p220
    %p222 = scmp.ne.s32.totalorder %s211, %s214
    %p223 = scmp.eq.s32.totalorder %s18, 1
    %p224 = por %p222, %p223
    %p225 = scmp.ne.s32.totalorder %s214, %s215
    %p226 = scmp.eq.s32.totalorder %s18, 0
    %p227 = por %p225, %p226
    %p228 = scmp.ne.s32.totalorder %s214, %s215
    %p229 = scmp.eq.s32.totalorder %s19, 1
    %p230 = por %p228, %p229
    %p232 = scmp.ne.s32.totalorder %s215, %s231
    %p233 = scmp.eq.s32.totalorder %s19, 0
    %p234 = por %p232, %p233
    %p235 = scmp.le.s32.totalorder 1, %s13
    %p236 = scmp.lt.s32.totalorder %s13, 3
    %p237 = pnand %p235, %p236
    %p238 = pneg %p237
    // Predicated region
    $region9: #{spade_block.3} parent=5 // pred_check
      _
    $region10: #{spade_block.3} parent=5 // pred_check_branch
      %240 = sbr.rel (%p237) target = $region12
    $region11: #{spade_block.3} parent=5 // pred_region
      %s241 = ssub.s32 %s13, 1
      // Predicated region
      $region13: #{spade_block.3} parent=11 // pred_check
        %p242 = pneg %p178
      $region14: #{spade_block.3} parent=11 // pred_check_branch
        %244 = sbr.rel (%p242) target = $region16
      $region15: #{spade_block.3} parent=11 // pred_region
        _
      $region16: #{spade_block.3} parent=11 // pred_fallthru
        _
      // Predicated region
      $region17: #{spade_block.3} parent=11 // pred_check
        %p245 = pneg %p199
      $region18: #{spade_block.3} parent=11 // pred_check_branch
        %247 = sbr.rel (%p245) target = $region20
      $region19: #{spade_block.3} parent=11 // pred_region
        _
      $region20: #{spade_block.3} parent=11 // pred_fallthru
        _
    $region12: #{spade_block.3} parent=5 // pred_fallthru
      _
    %p248 = scmp.lt.s32.totalorder %s13, 2
    // Predicated region
    $region21: #{spade_block.3} parent=5 // pred_check
      %p249 = pneg %p248
    $region22: #{spade_block.3} parent=5 // pred_check_branch
      %251 = sbr.rel (%p249) target = $region24
    $region23: #{spade_block.3} parent=5 // pred_region
      // Predicated region
      $region25: #{spade_block.3} parent=23 // pred_check
        %p252 = pneg %p47
      $region26: #{spade_block.3} parent=23 // pred_check_branch
        %254 = sbr.rel (%p252) target = $region28
      $region27: #{spade_block.3} parent=23 // pred_region
        %s255 = smul.u32 32, %s20
        %p256 = scmp.lt.s32.totalorder %s21, 1
        %s257 = scalar_select %p256, %s21, 1
        %p258 = scmp.lt.s32.totalorder %s255, 31
        %s259 = scalar_select %p258, %s255, 31
        %s260 = smul.addr %s257, 32
        %s261 = sadd.s32 %s259, %s260
        %s262 = smul.addr %s261, 8
        %s263 = scalar_lea.vmem %s0, %s262
        %s264 = smul.u32 32, %s20
      $region28: #{spade_block.3} parent=23 // pred_fallthru
        _
      // Predicated region
      $region29: #{spade_block.3} parent=23 // pred_check
        %p265 = pneg %p73
      $region30: #{spade_block.3} parent=23 // pred_check_branch
        %267 = sbr.rel (%p265) target = $region32
      $region31: #{spade_block.3} parent=23 // pred_region
        %p268 = scmp.lt.s32.totalorder %s21, 1
        %s269 = scalar_select %p268, %s21, 1
        %s270 = scalar_lea.vmem %s1, %s269
      $region32: #{spade_block.3} parent=23 // pred_fallthru
        _
      // Predicated region
      $region33: #{spade_block.3} parent=23 // pred_check
        %p271 = pneg %p99
      $region34: #{spade_block.3} parent=23 // pred_check_branch
        %273 = sbr.rel (%p271) target = $region36
      $region35: #{spade_block.3} parent=23 // pred_region
        %p274 = scmp.lt.s32.totalorder %s21, 1
        %s275 = scalar_select %p274, %s21, 1
        %s276 = scalar_lea.vmem %s2, %s275
      $region36: #{spade_block.3} parent=23 // pred_fallthru
        _
      // Predicated region
      $region37: #{spade_block.3} parent=23 // pred_check
        %p277 = pneg %p125
      $region38: #{spade_block.3} parent=23 // pred_check_branch
        %279 = sbr.rel (%p277) target = $region40
      $region39: #{spade_block.3} parent=23 // pred_region
        %p280 = scmp.lt.s32.totalorder %s21, 1
        %s281 = scalar_select %p280, %s21, 1
        %s282 = scalar_lea.vmem %s3, %s281
      $region40: #{spade_block.3} parent=23 // pred_fallthru
        _
      // Predicated region
      $region41: #{spade_block.3} parent=23 // pred_check
        %p283 = pneg %p151
      $region42: #{spade_block.3} parent=23 // pred_check_branch
        %285 = sbr.rel (%p283) target = $region44
      $region43: #{spade_block.3} parent=23 // pred_region
        %p286 = scmp.lt.s32.totalorder %s21, 1
        %s287 = scalar_select %p286, %s21, 1
        %s288 = scalar_lea.vmem %s4, %s287
      $region44: #{spade_block.3} parent=23 // pred_fallthru
        _
    $region24: #{spade_block.3} parent=5 // pred_fallthru
      _
    %p289 = scmp.le.s32.totalorder 1, %s13
    %p290 = scmp.lt.s32.totalorder %s13, 3
    %p291 = pnand %p289, %p290
    %p292 = pneg %p291
    // Predicated region
    $region45: #{spade_block.3} parent=5 // pred_check
      _
    $region46: #{spade_block.3} parent=5 // pred_check_branch
      %294 = sbr.rel (%p291) target = $region48
    $region47: #{spade_block.3} parent=5 // pred_region
      %s295 = ssub.s32 %s13, 1
      %s296 = smul.u32 32, %s22
      %p297 = scmp.lt.s32.totalorder %s23, 1
      %s298 = scalar_select %p297, %s23, 1
      %p299 = scmp.lt.s32.totalorder %s296, 31
      %s300 = scalar_select %p299, %s296, 31
      %s301 = smul.addr %s298, 32
      %s302 = sadd.s32 %s300, %s301
      %s303 = smul.addr %s302, 8
      %s304 = scalar_lea.vmem %s0, %s303
      %p305 = pneg %p53
      %p306 = pneg %p50
      %p307 = scmp.lt.s32.totalorder %s23, 1
      %s308 = scalar_select %p307, %s23, 1
      %s309 = scalar_lea.vmem %s1, %s308
      %p310 = pneg %p79
      %p311 = pneg %p76
      %p312 = scmp.lt.s32.totalorder %s23, 1
      %s313 = scalar_select %p312, %s23, 1
      %s314 = scalar_lea.vmem %s2, %s313
      %p315 = pneg %p105
      %p316 = pneg %p102
      %p317 = scmp.lt.s32.totalorder %s23, 1
      %s318 = scalar_select %p317, %s23, 1
      %s319 = scalar_lea.vmem %s3, %s318
      %p320 = pneg %p131
      %p321 = pneg %p128
      %p322 = scmp.lt.s32.totalorder %s23, 1
      %s323 = scalar_select %p322, %s23, 1
      %s324 = scalar_lea.vmem %s4, %s323
      %p325 = pneg %p157
      %p326 = pneg %p154
      %p327 = pneg %p178
      %p328 = pneg %p175
      %p329 = pneg %p199
      %p330 = pneg %p196
      %p331 = pneg %p227
      %p332 = pneg %p224
      %s333 = smul.u32 32, %s22
      %p334 = scmp.lt.s32.totalorder %s23, 1
      %s335 = scalar_select %p334, %s23, 1
      %p336 = scmp.lt.s32.totalorder %s333, 31
      %s337 = scalar_select %p336, %s333, 31
      %s338 = smul.addr %s335, 32
      %s339 = sadd.s32 %s337, %s338
      %s340 = smul.addr %s339, 8
      %s341 = scalar_lea.vmem %s7, %s340
      %s342 = smul.u32 32, %s22
      %p343 = scmp.lt.s32.totalorder %s23, 1
      %s344 = scalar_select %p343, %s23, 1
      %p345 = scmp.lt.s32.totalorder %s342, 31
      %s346 = scalar_select %p345, %s342, 31
      %s347 = smul.addr %s344, 32
      %s348 = sadd.s32 %s346, %s347
      %s349 = smul.addr %s348, 8
      %s350 = scalar_lea.vmem %s0, %s349
      %s351 = smul.u32 32, %s22
      %p352 = scmp.lt.s32.totalorder %s23, 1
      %s353 = scalar_select %p352, %s23, 1
      %s354 = scalar_lea.vmem %s1, %s353
      %p355 = scmp.lt.s32.totalorder %s23, 1
      %s356 = scalar_select %p355, %s23, 1
      %s357 = scalar_lea.vmem %s2, %s356
      %p358 = scmp.lt.s32.totalorder %s23, 1
      %s359 = scalar_select %p358, %s23, 1
      %s360 = scalar_lea.vmem %s3, %s359
      %p361 = scmp.lt.s32.totalorder %s23, 1
      %s362 = scalar_select %p361, %s23, 1
      %s363 = scalar_lea.vmem %s4, %s362
      %s364 = smul.u32 32, %s22
      %p365 = scmp.lt.s32.totalorder %s23, 1
      %s366 = scalar_select %p365, %s23, 1
      %p367 = scmp.lt.s32.totalorder %s364, 31
      %s368 = scalar_select %p367, %s364, 31
      %s369 = smul.addr %s366, 32
      %s370 = sadd.s32 %s368, %s369
      %s371 = smul.addr %s370, 8
      %s372 = scalar_lea.vmem %s7, %s371
      %s373 = smul.u32 32, %s22
      %v374 = vld [vmem:[%s360] sm:$0x1]
      %v375 = vld [vmem:[%s363] sm:$0x1]
      %v376 = vld [vmem:[%s350] sm:$0xff]
      %v377 = vld [vmem:[%s350 + $0x8] sm:$0xff]
      %v378 = vld [vmem:[%s350 + $0x10] sm:$0xff]
      %v379 = vld [vmem:[%s350 + $0x18] sm:$0xff]
      %v380 = vld [vmem:[%s350 + $0x20] sm:$0xff]
      %v381 = vld [vmem:[%s350 + $0x28] sm:$0xff]
      %v382 = vld [vmem:[%s350 + $0x30] sm:$0xff]
      %v383 = vld [vmem:[%s350 + $0x38] sm:$0xff]
      %v384 = vld [vmem:[%s350 + $0x40] sm:$0xff]
      %v385 = vld [vmem:[%s350 + $0x48] sm:$0xff]
      %v386 = vld [vmem:[%s350 + $0x50] sm:$0xff]
      %v387 = vld [vmem:[%s350 + $0x58] sm:$0xff]
      %v388 = vld [vmem:[%s350 + $0x60] sm:$0xff]
      %v389 = vld [vmem:[%s350 + $0x68] sm:$0xff]
      %v390 = vld [vmem:[%s350 + $0x70] sm:$0xff]
      %v391 = vld [vmem:[%s350 + $0x78] sm:$0xff]
      %v392 = vld [vmem:[%s350 + $0x80] sm:$0xff]
      %v393 = vld [vmem:[%s350 + $0x88] sm:$0xff]
      %v394 = vld [vmem:[%s350 + $0x90] sm:$0xff]
      %v395 = vld [vmem:[%s350 + $0x98] sm:$0xff]
      %v396 = vld [vmem:[%s350 + $0xa0] sm:$0xff]
      %v397 = vld [vmem:[%s350 + $0xa8] sm:$0xff]
      %v398 = vld [vmem:[%s350 + $0xb0] sm:$0xff]
      %v399 = vld [vmem:[%s350 + $0xb8] sm:$0xff]
      %v400 = vld [vmem:[%s350 + $0xc0] sm:$0xff]
      %v401 = vld [vmem:[%s350 + $0xc8] sm:$0xff]
      %v402 = vld [vmem:[%s350 + $0xd0] sm:$0xff]
      %v403 = vld [vmem:[%s350 + $0xd8] sm:$0xff]
      %v404 = vld [vmem:[%s350 + $0xe0] sm:$0xff]
      %v405 = vld [vmem:[%s350 + $0xe8] sm:$0xff]
      %v406 = vld [vmem:[%s350 + $0xf0] sm:$0xff]
      %v407 = vld [vmem:[%s350 + $0xf8] sm:$0xff]
      %v408 = vld [vmem:[%s354] sm:$0x1]
      %v410 = vlaneseq
      %v411 = vshrl.u32 %v410, 7
      %v412 = vsub.s32 0, %v411
      %v413 = vrot.slane %v408, %v412
      %v415 = vsub.f32 %v376, %v413
      %v416 = vsub.f32 %v377, %v413
      %v417 = vsub.f32 %v378, %v413
      %v418 = vsub.f32 %v379, %v413
      %v419 = vsub.f32 %v380, %v413
      %v420 = vsub.f32 %v381, %v413
      %v421 = vsub.f32 %v382, %v413
      %v422 = vsub.f32 %v383, %v413
      %v423 = vsub.f32 %v384, %v413
      %v424 = vsub.f32 %v385, %v413
      %v425 = vsub.f32 %v386, %v413
      %v426 = vsub.f32 %v387, %v413
      %v427 = vsub.f32 %v388, %v413
      %v428 = vsub.f32 %v389, %v413
      %v429 = vsub.f32 %v390, %v413
      %v430 = vsub.f32 %v391, %v413
      %v431 = vsub.f32 %v392, %v413
      %v432 = vsub.f32 %v393, %v413
      %v433 = vsub.f32 %v394, %v413
      %v434 = vsub.f32 %v395, %v413
      %v435 = vsub.f32 %v396, %v413
      %v436 = vsub.f32 %v397, %v413
      %v437 = vsub.f32 %v398, %v413
      %v438 = vsub.f32 %v399, %v413
      %v439 = vsub.f32 %v400, %v413
      %v440 = vsub.f32 %v401, %v413
      %v441 = vsub.f32 %v402, %v413
      %v442 = vsub.f32 %v403, %v413
      %v443 = vsub.f32 %v404, %v413
      %v444 = vsub.f32 %v405, %v413
      %v445 = vsub.f32 %v406, %v413
      %v446 = vsub.f32 %v407, %v413
      %v447 = vld [vmem:[%s357] sm:$0x1]
      %v449 = vlaneseq
      %v450 = vshrl.u32 %v449, 7
      %v451 = vsub.s32 0, %v450
      %v452 = vrot.slane %v447, %v451
      %v454 = vmul.f32 %v415, %v452
      %v455 = vmul.f32 %v416, %v452
      %v456 = vmul.f32 %v417, %v452
      %v457 = vmul.f32 %v418, %v452
      %v458 = vmul.f32 %v419, %v452
      %v459 = vmul.f32 %v420, %v452
      %v460 = vmul.f32 %v421, %v452
      %v461 = vmul.f32 %v422, %v452
      %v462 = vmul.f32 %v423, %v452
      %v463 = vmul.f32 %v424, %v452
      %v464 = vmul.f32 %v425, %v452
      %v465 = vmul.f32 %v426, %v452
      %v466 = vmul.f32 %v427, %v452
      %v467 = vmul.f32 %v428, %v452
      %v468 = vmul.f32 %v429, %v452
      %v469 = vmul.f32 %v430, %v452
      %v470 = vmul.f32 %v431, %v452
      %v471 = vmul.f32 %v432, %v452
      %v472 = vmul.f32 %v433, %v452
      %v473 = vmul.f32 %v434, %v452
      %v474 = vmul.f32 %v435, %v452
      %v475 = vmul.f32 %v436, %v452
      %v476 = vmul.f32 %v437, %v452
      %v477 = vmul.f32 %v438, %v452
      %v478 = vmul.f32 %v439, %v452
      %v479 = vmul.f32 %v440, %v452
      %v480 = vmul.f32 %v441, %v452
      %v481 = vmul.f32 %v442, %v452
      %v482 = vmul.f32 %v443, %v452
      %v483 = vmul.f32 %v444, %v452
      %v484 = vmul.f32 %v445, %v452
      %v485 = vmul.f32 %v446, %v452
      %v487 = vlaneseq
      %v488 = vshrl.u32 %v487, 7
      %v489 = vsub.s32 0, %v488
      %v490 = vrot.slane %v374, %v489
      %v492 = vmul.f32 %v454, %v490
      %v493 = vmul.f32 %v455, %v490
      %v494 = vmul.f32 %v456, %v490
      %v495 = vmul.f32 %v457, %v490
      %v496 = vmul.f32 %v458, %v490
      %v497 = vmul.f32 %v459, %v490
      %v498 = vmul.f32 %v460, %v490
      %v499 = vmul.f32 %v461, %v490
      %v500 = vmul.f32 %v462, %v490
      %v501 = vmul.f32 %v463, %v490
      %v502 = vmul.f32 %v464, %v490
      %v503 = vmul.f32 %v465, %v490
      %v504 = vmul.f32 %v466, %v490
      %v505 = vmul.f32 %v467, %v490
      %v506 = vmul.f32 %v468, %v490
      %v507 = vmul.f32 %v469, %v490
      %v508 = vmul.f32 %v470, %v490
      %v509 = vmul.f32 %v471, %v490
      %v510 = vmul.f32 %v472, %v490
      %v511 = vmul.f32 %v473, %v490
      %v512 = vmul.f32 %v474, %v490
      %v513 = vmul.f32 %v475, %v490
      %v514 = vmul.f32 %v476, %v490
      %v515 = vmul.f32 %v477, %v490
      %v516 = vmul.f32 %v478, %v490
      %v517 = vmul.f32 %v479, %v490
      %v518 = vmul.f32 %v480, %v490
      %v519 = vmul.f32 %v481, %v490
      %v520 = vmul.f32 %v482, %v490
      %v521 = vmul.f32 %v483, %v490
      %v522 = vmul.f32 %v484, %v490
      %v523 = vmul.f32 %v485, %v490
      %v525 = vlaneseq
      %v526 = vshrl.u32 %v525, 7
      %v527 = vsub.s32 0, %v526
      %v528 = vrot.slane %v375, %v527
      %v530 = vadd.f32 %v492, %v528
      %v531 = vadd.f32 %v493, %v528
      %v532 = vadd.f32 %v494, %v528
      %v533 = vadd.f32 %v495, %v528
      %v534 = vadd.f32 %v496, %v528
      %v535 = vadd.f32 %v497, %v528
      %v536 = vadd.f32 %v498, %v528
      %v537 = vadd.f32 %v499, %v528
      %v538 = vadd.f32 %v500, %v528
      %v539 = vadd.f32 %v501, %v528
      %v540 = vadd.f32 %v502, %v528
      %v541 = vadd.f32 %v503, %v528
      %v542 = vadd.f32 %v504, %v528
      %v543 = vadd.f32 %v505, %v528
      %v544 = vadd.f32 %v506, %v528
      %v545 = vadd.f32 %v507, %v528
      %v546 = vadd.f32 %v508, %v528
      %v547 = vadd.f32 %v509, %v528
      %v548 = vadd.f32 %v510, %v528
      %v549 = vadd.f32 %v511, %v528
      %v550 = vadd.f32 %v512, %v528
      %v551 = vadd.f32 %v513, %v528
      %v552 = vadd.f32 %v514, %v528
      %v553 = vadd.f32 %v515, %v528
      %v554 = vadd.f32 %v516, %v528
      %v555 = vadd.f32 %v517, %v528
      %v556 = vadd.f32 %v518, %v528
      %v557 = vadd.f32 %v519, %v528
      %v558 = vadd.f32 %v520, %v528
      %v559 = vadd.f32 %v521, %v528
      %v560 = vadd.f32 %v522, %v528
      %v561 = vadd.f32 %v523, %v528
      %vm562 = vcmp.ge.f32.partialorder %v530, 0.0
      %vm563 = vcmp.ge.f32.partialorder %v531, 0.0
      %vm564 = vcmp.ge.f32.partialorder %v532, 0.0
      %vm565 = vcmp.ge.f32.partialorder %v533, 0.0
      %vm566 = vcmp.ge.f32.partialorder %v534, 0.0
      %vm567 = vcmp.ge.f32.partialorder %v535, 0.0
      %vm568 = vcmp.ge.f32.partialorder %v536, 0.0
      %vm569 = vcmp.ge.f32.partialorder %v537, 0.0
      %vm570 = vcmp.ge.f32.partialorder %v538, 0.0
      %vm571 = vcmp.ge.f32.partialorder %v539, 0.0
      %vm572 = vcmp.ge.f32.partialorder %v540, 0.0
      %vm573 = vcmp.ge.f32.partialorder %v541, 0.0
      %vm574 = vcmp.ge.f32.partialorder %v542, 0.0
      %vm575 = vcmp.ge.f32.partialorder %v543, 0.0
      %vm576 = vcmp.ge.f32.partialorder %v544, 0.0
      %vm577 = vcmp.ge.f32.partialorder %v545, 0.0
      %vm578 = vcmp.ge.f32.partialorder %v546, 0.0
      %vm579 = vcmp.ge.f32.partialorder %v547, 0.0
      %vm580 = vcmp.ge.f32.partialorder %v548, 0.0
      %vm581 = vcmp.ge.f32.partialorder %v549, 0.0
      %vm582 = vcmp.ge.f32.partialorder %v550, 0.0
      %vm583 = vcmp.ge.f32.partialorder %v551, 0.0
      %vm584 = vcmp.ge.f32.partialorder %v552, 0.0
      %vm585 = vcmp.ge.f32.partialorder %v553, 0.0
      %vm586 = vcmp.ge.f32.partialorder %v554, 0.0
      %vm587 = vcmp.ge.f32.partialorder %v555, 0.0
      %vm588 = vcmp.ge.f32.partialorder %v556, 0.0
      %vm589 = vcmp.ge.f32.partialorder %v557, 0.0
      %vm590 = vcmp.ge.f32.partialorder %v558, 0.0
      %vm591 = vcmp.ge.f32.partialorder %v559, 0.0
      %vm592 = vcmp.ge.f32.partialorder %v560, 0.0
      %vm593 = vcmp.ge.f32.partialorder %v561, 0.0
      %v594 = vmul.f32 %v530, 0.2
      %v595 = vmul.f32 %v531, 0.2
      %v596 = vmul.f32 %v532, 0.2
      %v597 = vmul.f32 %v533, 0.2
      %v598 = vmul.f32 %v534, 0.2
      %v599 = vmul.f32 %v535, 0.2
      %v600 = vmul.f32 %v536, 0.2
      %v601 = vmul.f32 %v537, 0.2
      %v602 = vmul.f32 %v538, 0.2
      %v603 = vmul.f32 %v539, 0.2
      %v604 = vmul.f32 %v540, 0.2
      %v605 = vmul.f32 %v541, 0.2
      %v606 = vmul.f32 %v542, 0.2
      %v607 = vmul.f32 %v543, 0.2
      %v608 = vmul.f32 %v544, 0.2
      %v609 = vmul.f32 %v545, 0.2
      %v610 = vmul.f32 %v546, 0.2
      %v611 = vmul.f32 %v547, 0.2
      %v612 = vmul.f32 %v548, 0.2
      %v613 = vmul.f32 %v549, 0.2
      %v614 = vmul.f32 %v550, 0.2
      %v615 = vmul.f32 %v551, 0.2
      %v616 = vmul.f32 %v552, 0.2
      %v617 = vmul.f32 %v553, 0.2
      %v618 = vmul.f32 %v554, 0.2
      %v619 = vmul.f32 %v555, 0.2
      %v620 = vmul.f32 %v556, 0.2
      %v621 = vmul.f32 %v557, 0.2
      %v622 = vmul.f32 %v558, 0.2
      %v623 = vmul.f32 %v559, 0.2
      %v624 = vmul.f32 %v560, 0.2
      %v625 = vmul.f32 %v561, 0.2
      %v626 = vsel %vm562, %v530, %v594
      %v627 = vsel %vm563, %v531, %v595
      %v628 = vsel %vm564, %v532, %v596
      %v629 = vsel %vm565, %v533, %v597
      %v630 = vsel %vm566, %v534, %v598
      %v631 = vsel %vm567, %v535, %v599
      %v632 = vsel %vm568, %v536, %v600
      %v633 = vsel %vm569, %v537, %v601
      %v634 = vsel %vm570, %v538, %v602
      %v635 = vsel %vm571, %v539, %v603
      %v636 = vsel %vm572, %v540, %v604
      %v637 = vsel %vm573, %v541, %v605
      %v638 = vsel %vm574, %v542, %v606
      %v639 = vsel %vm575, %v543, %v607
      %v640 = vsel %vm576, %v544, %v608
      %v641 = vsel %vm577, %v545, %v609
      %v642 = vsel %vm578, %v546, %v610
      %v643 = vsel %vm579, %v547, %v611
      %v644 = vsel %vm580, %v548, %v612
      %v645 = vsel %vm581, %v549, %v613
      %v646 = vsel %vm582, %v550, %v614
      %v647 = vsel %vm583, %v551, %v615
      %v648 = vsel %vm584, %v552, %v616
      %v649 = vsel %vm585, %v553, %v617
      %v650 = vsel %vm586, %v554, %v618
      %v651 = vsel %vm587, %v555, %v619
      %v652 = vsel %vm588, %v556, %v620
      %v653 = vsel %vm589, %v557, %v621
      %v654 = vsel %vm590, %v558, %v622
      %v655 = vsel %vm591, %v559, %v623
      %v656 = vsel %vm592, %v560, %v624
      %v657 = vsel %vm593, %v561, %v625
      %v658 = vld [vmem:[%s5] sm:$0xff]
      %v659 = vld [vmem:[%s5 + $0x8] sm:$0xff]
      %v660 = vld [vmem:[%s5 + $0x10] sm:$0xff]
      %v661 = vld [vmem:[%s5 + $0x18] sm:$0xff]
      %v662 = vld [vmem:[%s5 + $0x20] sm:$0xff]
      %v663 = vld [vmem:[%s5 + $0x28] sm:$0xff]
      %v664 = vld [vmem:[%s5 + $0x30] sm:$0xff]
      %v665 = vld [vmem:[%s5 + $0x38] sm:$0xff]
      %v666 = vld [vmem:[%s5 + $0x40] sm:$0xff]
      %v667 = vld [vmem:[%s5 + $0x48] sm:$0xff]
      %v668 = vld [vmem:[%s5 + $0x50] sm:$0xff]
      %v669 = vld [vmem:[%s5 + $0x58] sm:$0xff]
      %v670 = vld [vmem:[%s5 + $0x60] sm:$0xff]
      %v671 = vld [vmem:[%s5 + $0x68] sm:$0xff]
      %v672 = vld [vmem:[%s5 + $0x70] sm:$0xff]
      %v673 = vld [vmem:[%s5 + $0x78] sm:$0xff]
      %v674 = vld [vmem:[%s6] sm:$0x1]
      %v676 = vlaneseq
      %v677 = vshrl.u32 %v676, 7
      %v678 = vsub.s32 0, %v677
      %v679 = vrot.slane %v674, %v678
      %681 = vmatprep.subr.mxu0 0.0
      %682 = vmatpush1.msra.mxu0 %v673
      %683 = vmatprep.subr.mxu0 0.0
      %684 = vmatpush1.msra.mxu0 %v672
      %685 = vmatprep.subr.mxu0 0.0
      %686 = vmatpush1.msra.mxu0 %v671
      %687 = vmatprep.subr.mxu0 0.0
      %688 = vmatpush1.msra.mxu0 %v670
      %689 = vmatprep.subr.mxu0 0.0
      %690 = vmatpush1.msra.mxu0 %v669
      %691 = vmatprep.subr.mxu0 0.0
      %692 = vmatpush1.msra.mxu0 %v668
      %693 = vmatprep.subr.mxu0 0.0
      %694 = vmatpush1.msra.mxu0 %v667
      %695 = vmatprep.subr.mxu0 0.0
      %696 = vmatpush1.msra.mxu0 %v666
      %697 = vmatprep.subr.mxu0 0.0
      %698 = vmatpush1.msra.mxu0 %v665
      %699 = vmatprep.subr.mxu0 0.0
      %700 = vmatpush1.msra.mxu0 %v664
      %701 = vmatprep.subr.mxu0 0.0
      %702 = vmatpush1.msra.mxu0 %v663
      %703 = vmatprep.subr.mxu0 0.0
      %704 = vmatpush1.msra.mxu0 %v662
      %705 = vmatprep.subr.mxu0 0.0
      %706 = vmatpush1.msra.mxu0 %v661
      %707 = vmatprep.subr.mxu0 0.0
      %708 = vmatpush1.msra.mxu0 %v660
      %709 = vmatprep.subr.mxu0 0.0
      %710 = vmatpush1.msra.mxu0 %v659
      %711 = vmatprep.subr.mxu0 0.0
      %712 = vmatpush1.msra.mxu0 %v658
      %713 = vmatprep.subr.mxu0 0.0
      %714 = vmatpush2.msra.mxu0 0.0
      %715 = vmatprep.subr.mxu0 0.0
      %716 = vmatpush2.msra.mxu0 0.0
      %717 = vmatprep.subr.mxu0 0.0
      %718 = vmatpush2.msra.mxu0 0.0
      %719 = vmatprep.subr.mxu0 0.0
      %720 = vmatpush2.msra.mxu0 0.0
      %721 = vmatprep.subr.mxu0 0.0
      %722 = vmatpush2.msra.mxu0 0.0
      %723 = vmatprep.subr.mxu0 0.0
      %724 = vmatpush2.msra.mxu0 0.0
      %725 = vmatprep.subr.mxu0 0.0
      %726 = vmatpush2.msra.mxu0 0.0
      %727 = vmatprep.subr.mxu0 0.0
      %728 = vmatpush2.msra.mxu0 0.0
      %729 = vmatprep.subr.mxu0 0.0
      %730 = vmatpush2.msra.mxu0 0.0
      %731 = vmatprep.subr.mxu0 0.0
      %732 = vmatpush2.msra.mxu0 0.0
      %733 = vmatprep.subr.mxu0 0.0
      %734 = vmatpush2.msra.mxu0 0.0
      %735 = vmatprep.subr.mxu0 0.0
      %736 = vmatpush2.msra.mxu0 0.0
      %737 = vmatprep.subr.mxu0 0.0
      %738 = vmatpush2.msra.mxu0 0.0
      %739 = vmatprep.subr.mxu0 0.0
      %740 = vmatpush2.msra.mxu0 0.0
      %741 = vmatprep.subr.mxu0 0.0
      %742 = vmatpush2.msra.mxu0 0.0
      %743 = vmatprep.subr.mxu0 0.0
      %744 = vmatpush2.msra.mxu0 0.0
      %745 = vmatprep.mubr.f32.mxu0 0.0
      %746 = vmatmul.mubr.f32.gmra.mxu0 %v626
      %v747 = vpop.f32.mrf.mxu0
      %v748 = vadd.f32 %v679, %v747
      %v749 = vpop.f32.mrf.mxu0
      %750 = vmatprep.mubr.f32.mxu0 0.0
      %751 = vmatmul.mubr.f32.gmra.mxu0 %v627
      %v752 = vpop.f32.mrf.mxu0
      %v753 = vadd.f32 %v679, %v752
      %v754 = vpop.f32.mrf.mxu0
      %755 = vmatprep.mubr.f32.mxu0 0.0
      %756 = vmatmul.mubr.f32.gmra.mxu0 %v628
      %v757 = vpop.f32.mrf.mxu0
      %v758 = vadd.f32 %v679, %v757
      %v759 = vpop.f32.mrf.mxu0
      %760 = vmatprep.mubr.f32.mxu0 0.0
      %761 = vmatmul.mubr.f32.gmra.mxu0 %v629
      %v762 = vpop.f32.mrf.mxu0
      %v763 = vadd.f32 %v679, %v762
      %v764 = vpop.f32.mrf.mxu0
      %765 = vmatprep.mubr.f32.mxu0 0.0
      %766 = vmatmul.mubr.f32.gmra.mxu0 %v630
      %v767 = vpop.f32.mrf.mxu0
      %v768 = vadd.f32 %v679, %v767
      %v769 = vpop.f32.mrf.mxu0
      %770 = vmatprep.mubr.f32.mxu0 0.0
      %771 = vmatmul.mubr.f32.gmra.mxu0 %v631
      %v772 = vpop.f32.mrf.mxu0
      %v773 = vadd.f32 %v679, %v772
      %v774 = vpop.f32.mrf.mxu0
      %775 = vmatprep.mubr.f32.mxu0 0.0
      %776 = vmatmul.mubr.f32.gmra.mxu0 %v632
      %v777 = vpop.f32.mrf.mxu0
      %v778 = vadd.f32 %v679, %v777
      %v779 = vpop.f32.mrf.mxu0
      %780 = vmatprep.mubr.f32.mxu0 0.0
      %781 = vmatmul.mubr.f32.gmra.mxu0 %v633
      %v782 = vpop.f32.mrf.mxu0
      %v783 = vadd.f32 %v679, %v782
      %v784 = vpop.f32.mrf.mxu0
      %785 = vmatprep.mubr.f32.mxu0 0.0
      %786 = vmatmul.mubr.f32.gmra.mxu0 %v634
      %v787 = vpop.f32.mrf.mxu0
      %v788 = vadd.f32 %v679, %v787
      %v789 = vpop.f32.mrf.mxu0
      %790 = vmatprep.mubr.f32.mxu0 0.0
      %791 = vmatmul.mubr.f32.gmra.mxu0 %v635
      %v792 = vpop.f32.mrf.mxu0
      %v793 = vadd.f32 %v679, %v792
      %v794 = vpop.f32.mrf.mxu0
      %795 = vmatprep.mubr.f32.mxu0 0.0
      %796 = vmatmul.mubr.f32.gmra.mxu0 %v636
      %v797 = vpop.f32.mrf.mxu0
      %v798 = vadd.f32 %v679, %v797
      %v799 = vpop.f32.mrf.mxu0
      %800 = vmatprep.mubr.f32.mxu0 0.0
      %801 = vmatmul.mubr.f32.gmra.mxu0 %v637
      %v802 = vpop.f32.mrf.mxu0
      %v803 = vadd.f32 %v679, %v802
      %v804 = vpop.f32.mrf.mxu0
      %805 = vmatprep.mubr.f32.mxu0 0.0
      %806 = vmatmul.mubr.f32.gmra.mxu0 %v638
      %v807 = vpop.f32.mrf.mxu0
      %v808 = vadd.f32 %v679, %v807
      %v809 = vpop.f32.mrf.mxu0
      %810 = vmatprep.mubr.f32.mxu0 0.0
      %811 = vmatmul.mubr.f32.gmra.mxu0 %v639
      %v812 = vpop.f32.mrf.mxu0
      %v813 = vadd.f32 %v679, %v812
      %v814 = vpop.f32.mrf.mxu0
      %815 = vmatprep.mubr.f32.mxu0 0.0
      %816 = vmatmul.mubr.f32.gmra.mxu0 %v640
      %v817 = vpop.f32.mrf.mxu0
      %v818 = vadd.f32 %v679, %v817
      %v819 = vpop.f32.mrf.mxu0
      %820 = vmatprep.mubr.f32.mxu0 0.0
      %821 = vmatmul.mubr.f32.gmra.mxu0 %v641
      %v822 = vpop.f32.mrf.mxu0
      %v823 = vadd.f32 %v679, %v822
      %v824 = vpop.f32.mrf.mxu0
      %825 = vmatprep.mubr.f32.mxu0 0.0
      %826 = vmatmul.mubr.f32.gmra.mxu0 %v642
      %v827 = vpop.f32.mrf.mxu0
      %v828 = vadd.f32 %v679, %v827
      %v829 = vpop.f32.mrf.mxu0
      %830 = vmatprep.mubr.f32.mxu0 0.0
      %831 = vmatmul.mubr.f32.gmra.mxu0 %v643
      %v832 = vpop.f32.mrf.mxu0
      %v833 = vadd.f32 %v679, %v832
      %v834 = vpop.f32.mrf.mxu0
      %835 = vmatprep.mubr.f32.mxu0 0.0
      %836 = vmatmul.mubr.f32.gmra.mxu0 %v644
      %v837 = vpop.f32.mrf.mxu0
      %v838 = vadd.f32 %v679, %v837
      %v839 = vpop.f32.mrf.mxu0
      %840 = vmatprep.mubr.f32.mxu0 0.0
      %841 = vmatmul.mubr.f32.gmra.mxu0 %v645
      %v842 = vpop.f32.mrf.mxu0
      %v843 = vadd.f32 %v679, %v842
      %v844 = vpop.f32.mrf.mxu0
      %845 = vmatprep.mubr.f32.mxu0 0.0
      %846 = vmatmul.mubr.f32.gmra.mxu0 %v646
      %v847 = vpop.f32.mrf.mxu0
      %v848 = vadd.f32 %v679, %v847
      %v849 = vpop.f32.mrf.mxu0
      %850 = vmatprep.mubr.f32.mxu0 0.0
      %851 = vmatmul.mubr.f32.gmra.mxu0 %v647
      %v852 = vpop.f32.mrf.mxu0
      %v853 = vadd.f32 %v679, %v852
      %v854 = vpop.f32.mrf.mxu0
      %855 = vmatprep.mubr.f32.mxu0 0.0
      %856 = vmatmul.mubr.f32.gmra.mxu0 %v648
      %v857 = vpop.f32.mrf.mxu0
      %v858 = vadd.f32 %v679, %v857
      %v859 = vpop.f32.mrf.mxu0
      %860 = vmatprep.mubr.f32.mxu0 0.0
      %861 = vmatmul.mubr.f32.gmra.mxu0 %v649
      %v862 = vpop.f32.mrf.mxu0
      %v863 = vadd.f32 %v679, %v862
      %v864 = vpop.f32.mrf.mxu0
      %865 = vmatprep.mubr.f32.mxu0 0.0
      %866 = vmatmul.mubr.f32.gmra.mxu0 %v650
      %v867 = vpop.f32.mrf.mxu0
      %v868 = vadd.f32 %v679, %v867
      %v869 = vpop.f32.mrf.mxu0
      %870 = vmatprep.mubr.f32.mxu0 0.0
      %871 = vmatmul.mubr.f32.gmra.mxu0 %v651
      %v872 = vpop.f32.mrf.mxu0
      %v873 = vadd.f32 %v679, %v872
      %v874 = vpop.f32.mrf.mxu0
      %875 = vmatprep.mubr.f32.mxu0 0.0
      %876 = vmatmul.mubr.f32.gmra.mxu0 %v652
      %v877 = vpop.f32.mrf.mxu0
      %v878 = vadd.f32 %v679, %v877
      %v879 = vpop.f32.mrf.mxu0
      %880 = vmatprep.mubr.f32.mxu0 0.0
      %881 = vmatmul.mubr.f32.gmra.mxu0 %v653
      %v882 = vpop.f32.mrf.mxu0
      %v883 = vadd.f32 %v679, %v882
      %v884 = vpop.f32.mrf.mxu0
      %885 = vmatprep.mubr.f32.mxu0 0.0
      %886 = vmatmul.mubr.f32.gmra.mxu0 %v654
      %v887 = vpop.f32.mrf.mxu0
      %v888 = vadd.f32 %v679, %v887
      %v889 = vpop.f32.mrf.mxu0
      %890 = vmatprep.mubr.f32.mxu0 0.0
      %891 = vmatmul.mubr.f32.gmra.mxu0 %v655
      %v892 = vpop.f32.mrf.mxu0
      %v893 = vadd.f32 %v679, %v892
      %v894 = vpop.f32.mrf.mxu0
      %895 = vmatprep.mubr.f32.mxu0 0.0
      %896 = vmatmul.mubr.f32.gmra.mxu0 %v656
      %v897 = vpop.f32.mrf.mxu0
      %v898 = vadd.f32 %v679, %v897
      %v899 = vpop.f32.mrf.mxu0
      %900 = vmatprep.mubr.f32.mxu0 0.0
      %901 = vmatmul.mubr.f32.gmra.mxu0 %v657
      %v902 = vpop.f32.mrf.mxu0
      %v903 = vadd.f32 %v679, %v902
      %v904 = vpop.f32.mrf.mxu0
      %905 = vdwg.mxu0
      %906 = vst [vmem:[%s372] sm:$0xff] %v748
      %907 = vst [vmem:[%s372 + $0x8] sm:$0xff] %v753
      %908 = vst [vmem:[%s372 + $0x10] sm:$0xff] %v758
      %909 = vst [vmem:[%s372 + $0x18] sm:$0xff] %v763
      %910 = vst [vmem:[%s372 + $0x20] sm:$0xff] %v768
      %911 = vst [vmem:[%s372 + $0x28] sm:$0xff] %v773
      %912 = vst [vmem:[%s372 + $0x30] sm:$0xff] %v778
      %913 = vst [vmem:[%s372 + $0x38] sm:$0xff] %v783
      %914 = vst [vmem:[%s372 + $0x40] sm:$0xff] %v788
      %915 = vst [vmem:[%s372 + $0x48] sm:$0xff] %v793
      %916 = vst [vmem:[%s372 + $0x50] sm:$0xff] %v798
      %917 = vst [vmem:[%s372 + $0x58] sm:$0xff] %v803
      %918 = vst [vmem:[%s372 + $0x60] sm:$0xff] %v808
      %919 = vst [vmem:[%s372 + $0x68] sm:$0xff] %v813
      %920 = vst [vmem:[%s372 + $0x70] sm:$0xff] %v818
      %921 = vst [vmem:[%s372 + $0x78] sm:$0xff] %v823
      %922 = vst [vmem:[%s372 + $0x80] sm:$0xff] %v828
      %923 = vst [vmem:[%s372 + $0x88] sm:$0xff] %v833
      %924 = vst [vmem:[%s372 + $0x90] sm:$0xff] %v838
      %925 = vst [vmem:[%s372 + $0x98] sm:$0xff] %v843
      %926 = vst [vmem:[%s372 + $0xa0] sm:$0xff] %v848
      %927 = vst [vmem:[%s372 + $0xa8] sm:$0xff] %v853
      %928 = vst [vmem:[%s372 + $0xb0] sm:$0xff] %v858
      %929 = vst [vmem:[%s372 + $0xb8] sm:$0xff] %v863
      %930 = vst [vmem:[%s372 + $0xc0] sm:$0xff] %v868
      %931 = vst [vmem:[%s372 + $0xc8] sm:$0xff] %v873
      %932 = vst [vmem:[%s372 + $0xd0] sm:$0xff] %v878
      %933 = vst [vmem:[%s372 + $0xd8] sm:$0xff] %v883
      %934 = vst [vmem:[%s372 + $0xe0] sm:$0xff] %v888
      %935 = vst [vmem:[%s372 + $0xe8] sm:$0xff] %v893
      %936 = vst [vmem:[%s372 + $0xf0] sm:$0xff] %v898
      %937 = vst [vmem:[%s372 + $0xf8] sm:$0xff] %v903
      %s938 = smul.u32 32, %s22
      %p939 = scmp.lt.s32.totalorder %s23, 1
      %s940 = scalar_select %p939, %s23, 1
      %p941 = scmp.lt.s32.totalorder %s938, 31
      %s942 = scalar_select %p941, %s938, 31
      %s943 = smul.addr %s940, 32
      %s944 = sadd.s32 %s942, %s943
      %s945 = smul.addr %s944, 8
      %s946 = scalar_lea.vmem %s7, %s945
      // Predicated region
      $region49: #{spade_block.3} parent=47 // pred_check
        %p947 = pneg %p224
      $region50: #{spade_block.3} parent=47 // pred_check_branch
        %949 = sbr.rel (%p947) target = $region52
      $region51: #{spade_block.3} parent=47 // pred_region
        %s950 = smul.u32 32, %s22
      $region52: #{spade_block.3} parent=47 // pred_fallthru
        _
    $region48: #{spade_block.3} parent=5 // pred_fallthru
      _
    %p951 = scmp.le.s32.totalorder 2, %s13
    // Predicated region
    $region53: #{spade_block.3} parent=5 // pred_check
      %p952 = pneg %p951
    $region54: #{spade_block.3} parent=5 // pred_check_branch
      %954 = sbr.rel (%p952) target = $region56
    $region55: #{spade_block.3} parent=5 // pred_region
      %s955 = ssub.s32 %s13, 2
      // Predicated region
      $region57: #{spade_block.3} parent=55 // pred_check
        %p956 = pneg %p230
      $region58: #{spade_block.3} parent=55 // pred_check_branch
        %958 = sbr.rel (%p956) target = $region60
      $region59: #{spade_block.3} parent=55 // pred_region
        %s959 = smul.u32 32, %s24
        %p960 = scmp.lt.s32.totalorder %s25, 1
        %s961 = scalar_select %p960, %s25, 1
        %p962 = scmp.lt.s32.totalorder %s959, 31
        %s963 = scalar_select %p962, %s959, 31
        %s964 = smul.addr %s961, 32
        %s965 = sadd.s32 %s963, %s964
        %s966 = smul.addr %s965, 8
        %s967 = scalar_lea.vmem %s7, %s966
      $region60: #{spade_block.3} parent=55 // pred_fallthru
        _
    $region56: #{spade_block.3} parent=5 // pred_fallthru
      _
  $region6: #{spade_block.3} parent=0 // loop_footer
    %s17 = sadd.s32 1, %s13
  $region7: #{spade_block.3} parent=0 // loop_footer_branch
    %12 = sbr.rel target = $region3
  $region8: #{spade_block.3} parent=0 // loop_exit
    _

// kernel: spade_block.2
$region0: #{spade_block.2}
  #allocation0 [shape = 'u32[]', space=smem, size = 0x4, offset = 0x4, fixed_abs, tag = 'smem constant byte address 0x4 - core index']
  #allocation1 [shape = 'u32[144,128]{1,0:T(1,128)}', space=vmem, size = 0x12000, scoped, tag = 'internal scratch']
  %s0 = inlined_call_operand.vmem [shape: f32[2,256,128], index: 0, kind: input, shape index: {}]
  %s1 = inlined_call_operand.vmem [shape: f32[2,1,128], index: 1, kind: input, shape index: {}]
  %s2 = inlined_call_operand.vmem [shape: f32[2,1,128], index: 2, kind: input, shape index: {}]
  %s3 = inlined_call_operand.vmem [shape: f32[2,1,128], index: 3, kind: input, shape index: {}]
  %s4 = inlined_call_operand.vmem [shape: f32[2,1,128], index: 4, kind: input, shape index: {}]
  %s5 = inlined_call_operand.vmem [shape: f32[128,128], index: 5, kind: input, shape index: {}]
  %s6 = inlined_call_operand.vmem [shape: f32[1,128], index: 6, kind: input, shape index: {}]
  %s7 = inlined_call_operand.vmem [shape: f32[2,256,128], index: 7, kind: output, shape index: {0}]
  %s8 = inlined_call_operand.vmem [shape: f32[2,1,2,128], index: 8, kind: output, shape index: {1}]
  %9 = xla_tuple %s7, %s8
  %s10 = sld [smem:[#allocation0]]
  $region69: #{spade_block.2} parent=0
    _
  %s12 = ssub.s32 1, %s10
  %s13 = scalar_select 0, %s12, %s10
  loop: start=0, step=1, limit=4
  $region2: #{spade_block.2} parent=0 // loop_pre_header
    _
  $region3: #{spade_block.2} parent=0 // loop_header
    %s15 = sphi 0, %s19
    %p16 = scmp.ge.s32.totalorder %s15, 4
    %s22 = sphi 0, %s34
    %s23 = sphi 0, %s30
    %s24 = sphi 0, %s22
    %s25 = sphi 0, %s23
    %s26 = sphi 0, %s24
    %s27 = sphi 0, %s25
    %s39 = sphi 0, %s41
    %s42 = sphi 0, %s39
    %s43 = sphi 0, %s42
    %s59 = sphi 0, %s43
    %s65 = sphi 0, %s67
    %s68 = sphi 0, %s65
    %s69 = sphi 0, %s68
    %s85 = sphi 0, %s69
    %s91 = sphi 0, %s93
    %s94 = sphi 0, %s91
    %s95 = sphi 0, %s94
    %s111 = sphi 0, %s95
    %s117 = sphi 0, %s119
    %s120 = sphi 0, %s117
    %s121 = sphi 0, %s120
    %s137 = sphi 0, %s121
    %s143 = sphi 0, %s145
    %s146 = sphi 0, %s143
    %s147 = sphi 0, %s146
    %s163 = sphi 0, %s147
    %s167 = sphi 0, %s167
    %s169 = sphi 0, %s167
    %s170 = sphi 0, %s169
    %s184 = sphi 0, %s170
    %s188 = sphi 0, %s188
    %s190 = sphi 0, %s188
    %s191 = sphi 0, %s190
    %s205 = sphi 0, %s191
    %s213 = sphi 0, %s215
    %s216 = sphi 0, %s213
    %s217 = sphi 0, %s216
    %s233 = sphi 0, %s217
    %s241 = sphi 0, %s243
    %s244 = sphi 0, %s241
    %s245 = sphi 0, %s244
    %s261 = sphi 0, %s245
  $region4: #{spade_block.2} parent=0 // loop_header_branch
    %18 = sbr.rel (%p16) target = $region8
  $region5: #{spade_block.2} parent=0 // loop_body
    %s20 = ssub.s32 %s15, 1
    %s21 = ssub.s32 %s15, 2
    %s28 = sadd.s32 1, %s23
    %p29 = scmp.ge.s32.totalorder %s28, 2
    %s30 = scalar_select %p29, 0, %s28
    %s31 = sadd.s32 1, %s22
    %s32 = scalar_select %p29, %s31, %s22
    %p33 = scmp.ge.s32.totalorder %s32, 1
    %s34 = scalar_select %p33, 0, %s32
    %s35 = ssub.s32 %s23, %s30
    %s36 = ssub.s32 %s22, %s34
    %s37 = sor.u32 %s35, %s36
    %p38 = scmp.eq.s32.totalorder %s37, 0
    %s40 = sadd.s32 %s39, 1
    %s41 = scalar_select %p38, %s39, %s40
    %p44 = pneg %p38
    %p45 = scmp.eq.s32.totalorder %s15, 1
    %p46 = por %p44, %p45
    %p47 = scmp.ne.s32.totalorder %s39, %s42
    %p48 = scmp.eq.s32.totalorder %s15, 0
    %p49 = por %p47, %p48
    %p50 = scmp.ne.s32.totalorder %s39, %s42
    %p51 = scmp.eq.s32.totalorder %s20, 1
    %p52 = por %p50, %p51
    %p53 = scmp.ne.s32.totalorder %s42, %s43
    %p54 = scmp.eq.s32.totalorder %s20, 0
    %p55 = por %p53, %p54
    %p56 = scmp.ne.s32.totalorder %s42, %s43
    %p57 = scmp.eq.s32.totalorder %s21, 1
    %p58 = por %p56, %p57
    %p60 = scmp.ne.s32.totalorder %s43, %s59
    %p61 = scmp.eq.s32.totalorder %s21, 0
    %p62 = por %p60, %p61
    %s63 = ssub.s32 %s23, %s30
    %p64 = scmp.eq.s32.totalorder %s63, 0
    %s66 = sadd.s32 %s65, 1
    %s67 = scalar_select %p64, %s65, %s66
    %p70 = pneg %p64
    %p71 = scmp.eq.s32.totalorder %s15, 1
    %p72 = por %p70, %p71
    %p73 = scmp.ne.s32.totalorder %s65, %s68
    %p74 = scmp.eq.s32.totalorder %s15, 0
    %p75 = por %p73, %p74
    %p76 = scmp.ne.s32.totalorder %s65, %s68
    %p77 = scmp.eq.s32.totalorder %s20, 1
    %p78 = por %p76, %p77
    %p79 = scmp.ne.s32.totalorder %s68, %s69
    %p80 = scmp.eq.s32.totalorder %s20, 0
    %p81 = por %p79, %p80
    %p82 = scmp.ne.s32.totalorder %s68, %s69
    %p83 = scmp.eq.s32.totalorder %s21, 1
    %p84 = por %p82, %p83
    %p86 = scmp.ne.s32.totalorder %s69, %s85
    %p87 = scmp.eq.s32.totalorder %s21, 0
    %p88 = por %p86, %p87
    %s89 = ssub.s32 %s23, %s30
    %p90 = scmp.eq.s32.totalorder %s89, 0
    %s92 = sadd.s32 %s91, 1
    %s93 = scalar_select %p90, %s91, %s92
    %p96 = pneg %p90
    %p97 = scmp.eq.s32.totalorder %s15, 1
    %p98 = por %p96, %p97
    %p99 = scmp.ne.s32.totalorder %s91, %s94
    %p100 = scmp.eq.s32.totalorder %s15, 0
    %p101 = por %p99, %p100
    %p102 = scmp.ne.s32.totalorder %s91, %s94
    %p103 = scmp.eq.s32.totalorder %s20, 1
    %p104 = por %p102, %p103
    %p105 = scmp.ne.s32.totalorder %s94, %s95
    %p106 = scmp.eq.s32.totalorder %s20, 0
    %p107 = por %p105, %p106
    %p108 = scmp.ne.s32.totalorder %s94, %s95
    %p109 = scmp.eq.s32.totalorder %s21, 1
    %p110 = por %p108, %p109
    %p112 = scmp.ne.s32.totalorder %s95, %s111
    %p113 = scmp.eq.s32.totalorder %s21, 0
    %p114 = por %p112, %p113
    %s115 = ssub.s32 %s23, %s30
    %p116 = scmp.eq.s32.totalorder %s115, 0
    %s118 = sadd.s32 %s117, 1
    %s119 = scalar_select %p116, %s117, %s118
    %p122 = pneg %p116
    %p123 = scmp.eq.s32.totalorder %s15, 1
    %p124 = por %p122, %p123
    %p125 = scmp.ne.s32.totalorder %s117, %s120
    %p126 = scmp.eq.s32.totalorder %s15, 0
    %p127 = por %p125, %p126
    %p128 = scmp.ne.s32.totalorder %s117, %s120
    %p129 = scmp.eq.s32.totalorder %s20, 1
    %p130 = por %p128, %p129
    %p131 = scmp.ne.s32.totalorder %s120, %s121
    %p132 = scmp.eq.s32.totalorder %s20, 0
    %p133 = por %p131, %p132
    %p134 = scmp.ne.s32.totalorder %s120, %s121
    %p135 = scmp.eq.s32.totalorder %s21, 1
    %p136 = por %p134, %p135
    %p138 = scmp.ne.s32.totalorder %s121, %s137
    %p139 = scmp.eq.s32.totalorder %s21, 0
    %p140 = por %p138, %p139
    %s141 = ssub.s32 %s23, %s30
    %p142 = scmp.eq.s32.totalorder %s141, 0
    %s144 = sadd.s32 %s143, 1
    %s145 = scalar_select %p142, %s143, %s144
    %p148 = pneg %p142
    %p149 = scmp.eq.s32.totalorder %s15, 1
    %p150 = por %p148, %p149
    %p151 = scmp.ne.s32.totalorder %s143, %s146
    %p152 = scmp.eq.s32.totalorder %s15, 0
    %p153 = por %p151, %p152
    %p154 = scmp.ne.s32.totalorder %s143, %s146
    %p155 = scmp.eq.s32.totalorder %s20, 1
    %p156 = por %p154, %p155
    %p157 = scmp.ne.s32.totalorder %s146, %s147
    %p158 = scmp.eq.s32.totalorder %s20, 0
    %p159 = por %p157, %p158
    %p160 = scmp.ne.s32.totalorder %s146, %s147
    %p161 = scmp.eq.s32.totalorder %s21, 1
    %p162 = por %p160, %p161
    %p164 = scmp.ne.s32.totalorder %s147, %s163
    %p165 = scmp.eq.s32.totalorder %s21, 0
    %p166 = por %p164, %p165
    %s168 = sadd.s32 %s167, 1
    %p171 = scmp.eq.s32.totalorder %s15, 1
    %p172 = scmp.ne.s32.totalorder %s167, %s169
    %p173 = scmp.eq.s32.totalorder %s15, 0
    %p174 = por %p172, %p173
    %p175 = scmp.ne.s32.totalorder %s167, %s169
    %p176 = scmp.eq.s32.totalorder %s20, 1
    %p177 = por %p175, %p176
    %p178 = scmp.ne.s32.totalorder %s169, %s170
    %p179 = scmp.eq.s32.totalorder %s20, 0
    %p180 = por %p178, %p179
    %p181 = scmp.ne.s32.totalorder %s169, %s170
    %p182 = scmp.eq.s32.totalorder %s21, 1
    %p183 = por %p181, %p182
    %p185 = scmp.ne.s32.totalorder %s170, %s184
    %p186 = scmp.eq.s32.totalorder %s21, 0
    %p187 = por %p185, %p186
    %s189 = sadd.s32 %s188, 1
    %p192 = scmp.eq.s32.totalorder %s15, 1
    %p193 = scmp.ne.s32.totalorder %s188, %s190
    %p194 = scmp.eq.s32.totalorder %s15, 0
    %p195 = por %p193, %p194
    %p196 = scmp.ne.s32.totalorder %s188, %s190
    %p197 = scmp.eq.s32.totalorder %s20, 1
    %p198 = por %p196, %p197
    %p199 = scmp.ne.s32.totalorder %s190, %s191
    %p200 = scmp.eq.s32.totalorder %s20, 0
    %p201 = por %p199, %p200
    %p202 = scmp.ne.s32.totalorder %s190, %s191
    %p203 = scmp.eq.s32.totalorder %s21, 1
    %p204 = por %p202, %p203
    %p206 = scmp.ne.s32.totalorder %s191, %s205
    %p207 = scmp.eq.s32.totalorder %s21, 0
    %p208 = por %p206, %p207
    %s209 = ssub.s32 %s23, %s30
    %s210 = ssub.s32 %s22, %s34
    %s211 = sor.u32 %s209, %s210
    %p212 = scmp.eq.s32.totalorder %s211, 0
    %s214 = sadd.s32 %s213, 1
    %s215 = scalar_select %p212, %s213, %s214
    %p218 = pneg %p212
    %p219 = scmp.eq.s32.totalorder %s15, 1
    %p220 = por %p218, %p219
    %p221 = scmp.ne.s32.totalorder %s213, %s216
    %p222 = scmp.eq.s32.totalorder %s15, 0
    %p223 = por %p221, %p222
    %p224 = scmp.ne.s32.totalorder %s213, %s216
    %p225 = scmp.eq.s32.totalorder %s20, 1
    %p226 = por %p224, %p225
    %p227 = scmp.ne.s32.totalorder %s216, %s217
    %p228 = scmp.eq.s32.totalorder %s20, 0
    %p229 = por %p227, %p228
    %p230 = scmp.ne.s32.totalorder %s216, %s217
    %p231 = scmp.eq.s32.totalorder %s21, 1
    %p232 = por %p230, %p231
    %p234 = scmp.ne.s32.totalorder %s217, %s233
    %p235 = scmp.eq.s32.totalorder %s21, 0
    %p236 = por %p234, %p235
    %s237 = ssub.s32 %s23, %s30
    %s238 = ssub.s32 %s22, %s34
    %s239 = sor.u32 %s237, %s238
    %p240 = scmp.eq.s32.totalorder %s239, 0
    %s242 = sadd.s32 %s241, 1
    %s243 = scalar_select %p240, %s241, %s242
    %p246 = pneg %p240
    %p247 = scmp.eq.s32.totalorder %s15, 1
    %p248 = por %p246, %p247
    %p249 = scmp.ne.s32.totalorder %s241, %s244
    %p250 = scmp.eq.s32.totalorder %s15, 0
    %p251 = por %p249, %p250
    %p252 = scmp.ne.s32.totalorder %s241, %s244
    %p253 = scmp.eq.s32.totalorder %s20, 1
    %p254 = por %p252, %p253
    %p255 = scmp.ne.s32.totalorder %s244, %s245
    %p256 = scmp.eq.s32.totalorder %s20, 0
    %p257 = por %p255, %p256
    %p258 = scmp.ne.s32.totalorder %s244, %s245
    %p259 = scmp.eq.s32.totalorder %s21, 1
    %p260 = por %p258, %p259
    %p262 = scmp.ne.s32.totalorder %s245, %s261
    %p263 = scmp.eq.s32.totalorder %s21, 0
    %p264 = por %p262, %p263
    %p265 = scmp.le.s32.totalorder 1, %s15
    %p266 = scmp.lt.s32.totalorder %s15, 3
    %p267 = pnand %p265, %p266
    %p268 = pneg %p267
    // Predicated region
    $region9: #{spade_block.2} parent=5 // pred_check
      _
    $region10: #{spade_block.2} parent=5 // pred_check_branch
      %270 = sbr.rel (%p267) target = $region12
    $region11: #{spade_block.2} parent=5 // pred_region
      %s271 = ssub.s32 %s15, 1
      // Predicated region
      $region13: #{spade_block.2} parent=11 // pred_check
        %p272 = pneg %p180
      $region14: #{spade_block.2} parent=11 // pred_check_branch
        %274 = sbr.rel (%p272) target = $region16
      $region15: #{spade_block.2} parent=11 // pred_region
        _
      $region16: #{spade_block.2} parent=11 // pred_fallthru
        _
      // Predicated region
      $region17: #{spade_block.2} parent=11 // pred_check
        %p275 = pneg %p201
      $region18: #{spade_block.2} parent=11 // pred_check_branch
        %277 = sbr.rel (%p275) target = $region20
      $region19: #{spade_block.2} parent=11 // pred_region
        _
      $region20: #{spade_block.2} parent=11 // pred_fallthru
        _
    $region12: #{spade_block.2} parent=5 // pred_fallthru
      _
    %p278 = scmp.lt.s32.totalorder %s15, 2
    // Predicated region
    $region21: #{spade_block.2} parent=5 // pred_check
      %p279 = pneg %p278
    $region22: #{spade_block.2} parent=5 // pred_check_branch
      %281 = sbr.rel (%p279) target = $region24
    $region23: #{spade_block.2} parent=5 // pred_region
      // Predicated region
      $region25: #{spade_block.2} parent=23 // pred_check
        %p282 = pneg %p49
      $region26: #{spade_block.2} parent=23 // pred_check_branch
        %284 = sbr.rel (%p282) target = $region28
      $region27: #{spade_block.2} parent=23 // pred_region
        %s285 = smul.u32 32, %s22
        %p286 = scmp.lt.s32.totalorder %s23, 1
        %s287 = scalar_select %p286, %s23, 1
        %p288 = scmp.lt.s32.totalorder %s285, 31
        %s289 = scalar_select %p288, %s285, 31
        %s290 = smul.addr %s287, 32
        %s291 = sadd.s32 %s289, %s290
        %s292 = smul.addr %s291, 8
        %s293 = scalar_lea.vmem %s0, %s292
        %s294 = smul.u32 32, %s22
      $region28: #{spade_block.2} parent=23 // pred_fallthru
        _
      // Predicated region
      $region29: #{spade_block.2} parent=23 // pred_check
        %p295 = pneg %p75
      $region30: #{spade_block.2} parent=23 // pred_check_branch
        %297 = sbr.rel (%p295) target = $region32
      $region31: #{spade_block.2} parent=23 // pred_region
        %p298 = scmp.lt.s32.totalorder %s23, 1
        %s299 = scalar_select %p298, %s23, 1
        %s300 = scalar_lea.vmem %s1, %s299
      $region32: #{spade_block.2} parent=23 // pred_fallthru
        _
      // Predicated region
      $region33: #{spade_block.2} parent=23 // pred_check
        %p301 = pneg %p101
      $region34: #{spade_block.2} parent=23 // pred_check_branch
        %303 = sbr.rel (%p301) target = $region36
      $region35: #{spade_block.2} parent=23 // pred_region
        %p304 = scmp.lt.s32.totalorder %s23, 1
        %s305 = scalar_select %p304, %s23, 1
        %s306 = scalar_lea.vmem %s2, %s305
      $region36: #{spade_block.2} parent=23 // pred_fallthru
        _
      // Predicated region
      $region37: #{spade_block.2} parent=23 // pred_check
        %p307 = pneg %p127
      $region38: #{spade_block.2} parent=23 // pred_check_branch
        %309 = sbr.rel (%p307) target = $region40
      $region39: #{spade_block.2} parent=23 // pred_region
        %p310 = scmp.lt.s32.totalorder %s23, 1
        %s311 = scalar_select %p310, %s23, 1
        %s312 = scalar_lea.vmem %s3, %s311
      $region40: #{spade_block.2} parent=23 // pred_fallthru
        _
      // Predicated region
      $region41: #{spade_block.2} parent=23 // pred_check
        %p313 = pneg %p153
      $region42: #{spade_block.2} parent=23 // pred_check_branch
        %315 = sbr.rel (%p313) target = $region44
      $region43: #{spade_block.2} parent=23 // pred_region
        %p316 = scmp.lt.s32.totalorder %s23, 1
        %s317 = scalar_select %p316, %s23, 1
        %s318 = scalar_lea.vmem %s4, %s317
      $region44: #{spade_block.2} parent=23 // pred_fallthru
        _
    $region24: #{spade_block.2} parent=5 // pred_fallthru
      _
    %p319 = scmp.le.s32.totalorder 1, %s15
    %p320 = scmp.lt.s32.totalorder %s15, 3
    %p321 = pnand %p319, %p320
    %p322 = pneg %p321
    // Predicated region
    $region45: #{spade_block.2} parent=5 // pred_check
      _
    $region46: #{spade_block.2} parent=5 // pred_check_branch
      %324 = sbr.rel (%p321) target = $region48
    $region47: #{spade_block.2} parent=5 // pred_region
      %s325 = ssub.s32 %s15, 1
      %s326 = smul.u32 32, %s24
      %p327 = scmp.lt.s32.totalorder %s25, 1
      %s328 = scalar_select %p327, %s25, 1
      %p329 = scmp.lt.s32.totalorder %s326, 31
      %s330 = scalar_select %p329, %s326, 31
      %s331 = smul.addr %s328, 32
      %s332 = sadd.s32 %s330, %s331
      %s333 = smul.addr %s332, 8
      %s334 = scalar_lea.vmem %s0, %s333
      %p335 = pneg %p55
      %p336 = pneg %p52
      %p337 = scmp.lt.s32.totalorder %s25, 1
      %s338 = scalar_select %p337, %s25, 1
      %s339 = scalar_lea.vmem %s1, %s338
      %p340 = pneg %p81
      %p341 = pneg %p78
      %p342 = scmp.lt.s32.totalorder %s25, 1
      %s343 = scalar_select %p342, %s25, 1
      %s344 = scalar_lea.vmem %s2, %s343
      %p345 = pneg %p107
      %p346 = pneg %p104
      %p347 = scmp.lt.s32.totalorder %s25, 1
      %s348 = scalar_select %p347, %s25, 1
      %s349 = scalar_lea.vmem %s3, %s348
      %p350 = pneg %p133
      %p351 = pneg %p130
      %p352 = scmp.lt.s32.totalorder %s25, 1
      %s353 = scalar_select %p352, %s25, 1
      %s354 = scalar_lea.vmem %s4, %s353
      %p355 = pneg %p159
      %p356 = pneg %p156
      %p357 = pneg %p180
      %p358 = pneg %p177
      %p359 = pneg %p201
      %p360 = pneg %p198
      %p361 = pneg %p229
      %p362 = pneg %p226
      %s363 = smul.u32 32, %s24
      %p364 = scmp.lt.s32.totalorder %s25, 1
      %s365 = scalar_select %p364, %s25, 1
      %p366 = scmp.lt.s32.totalorder %s363, 31
      %s367 = scalar_select %p366, %s363, 31
      %s368 = smul.addr %s365, 32
      %s369 = sadd.s32 %s367, %s368
      %s370 = smul.addr %s369, 8
      %s371 = scalar_lea.vmem %s7, %s370
      %p372 = pneg %p257
      %p373 = pneg %p254
      %p374 = scmp.lt.s32.totalorder %s25, 1
      %s375 = scalar_select %p374, %s25, 1
      %p376 = scmp.lt.s32.totalorder %s24, 0
      %s377 = scalar_select %p376, %s24, 0
      %s378 = sadd.s32 %s377, %s375
      %s379 = smul.addr %s378, 2
      %s380 = scalar_lea.vmem %s8, %s379
      %s381 = smul.u32 32, %s24
      %p382 = scmp.lt.s32.totalorder %s25, 1
      %s383 = scalar_select %p382, %s25, 1
      %p384 = scmp.lt.s32.totalorder %s381, 31
      %s385 = scalar_select %p384, %s381, 31
      %s386 = smul.addr %s383, 32
      %s387 = sadd.s32 %s385, %s386
      %s388 = smul.addr %s387, 8
      %s389 = scalar_lea.vmem %s0, %s388
      %s390 = smul.u32 32, %s24
      %p391 = scmp.lt.s32.totalorder %s25, 1
      %s392 = scalar_select %p391, %s25, 1
      %s393 = scalar_lea.vmem %s1, %s392
      %p394 = scmp.lt.s32.totalorder %s25, 1
      %s395 = scalar_select %p394, %s25, 1
      %s396 = scalar_lea.vmem %s2, %s395
      %p397 = scmp.lt.s32.totalorder %s25, 1
      %s398 = scalar_select %p397, %s25, 1
      %s399 = scalar_lea.vmem %s3, %s398
      %p400 = scmp.lt.s32.totalorder %s25, 1
      %s401 = scalar_select %p400, %s25, 1
      %s402 = scalar_lea.vmem %s4, %s401
      %s403 = smul.u32 32, %s24
      %p404 = scmp.lt.s32.totalorder %s25, 1
      %s405 = scalar_select %p404, %s25, 1
      %p406 = scmp.lt.s32.totalorder %s403, 31
      %s407 = scalar_select %p406, %s403, 31
      %s408 = smul.addr %s405, 32
      %s409 = sadd.s32 %s407, %s408
      %s410 = smul.addr %s409, 8
      %s411 = scalar_lea.vmem %s7, %s410
      %s412 = smul.u32 32, %s24
      %p413 = scmp.lt.s32.totalorder %s25, 1
      %s414 = scalar_select %p413, %s25, 1
      %p415 = scmp.lt.s32.totalorder %s24, 0
      %s416 = scalar_select %p415, %s24, 0
      %s417 = sadd.s32 %s416, %s414
      %s418 = smul.addr %s417, 2
      %s419 = scalar_lea.vmem %s8, %s418
      %v420 = vld [vmem:[%s399] sm:$0x1]
      %v421 = vld [vmem:[%s402] sm:$0x1]
      %v422 = vld [vmem:[%s389] sm:$0xff]
      %v423 = vld [vmem:[%s389 + $0x8] sm:$0xff]
      %v424 = vld [vmem:[%s389 + $0x10] sm:$0xff]
      %v425 = vld [vmem:[%s389 + $0x18] sm:$0xff]
      %v426 = vld [vmem:[%s389 + $0x20] sm:$0xff]
      %v427 = vld [vmem:[%s389 + $0x28] sm:$0xff]
      %v428 = vld [vmem:[%s389 + $0x30] sm:$0xff]
      %v429 = vld [vmem:[%s389 + $0x38] sm:$0xff]
      %v430 = vld [vmem:[%s389 + $0x40] sm:$0xff]
      %v431 = vld [vmem:[%s389 + $0x48] sm:$0xff]
      %v432 = vld [vmem:[%s389 + $0x50] sm:$0xff]
      %v433 = vld [vmem:[%s389 + $0x58] sm:$0xff]
      %v434 = vld [vmem:[%s389 + $0x60] sm:$0xff]
      %v435 = vld [vmem:[%s389 + $0x68] sm:$0xff]
      %v436 = vld [vmem:[%s389 + $0x70] sm:$0xff]
      %v437 = vld [vmem:[%s389 + $0x78] sm:$0xff]
      %v438 = vld [vmem:[%s389 + $0x80] sm:$0xff]
      %v439 = vld [vmem:[%s389 + $0x88] sm:$0xff]
      %v440 = vld [vmem:[%s389 + $0x90] sm:$0xff]
      %v441 = vld [vmem:[%s389 + $0x98] sm:$0xff]
      %v442 = vld [vmem:[%s389 + $0xa0] sm:$0xff]
      %v443 = vld [vmem:[%s389 + $0xa8] sm:$0xff]
      %v444 = vld [vmem:[%s389 + $0xb0] sm:$0xff]
      %v445 = vld [vmem:[%s389 + $0xb8] sm:$0xff]
      %v446 = vld [vmem:[%s389 + $0xc0] sm:$0xff]
      %v447 = vld [vmem:[%s389 + $0xc8] sm:$0xff]
      %v448 = vld [vmem:[%s389 + $0xd0] sm:$0xff]
      %v449 = vld [vmem:[%s389 + $0xd8] sm:$0xff]
      %v450 = vld [vmem:[%s389 + $0xe0] sm:$0xff]
      %v451 = vld [vmem:[%s389 + $0xe8] sm:$0xff]
      %v452 = vld [vmem:[%s389 + $0xf0] sm:$0xff]
      %v453 = vld [vmem:[%s389 + $0xf8] sm:$0xff]
      %v454 = vld [vmem:[%s393] sm:$0x1]
      %v456 = vlaneseq
      %v457 = vshrl.u32 %v456, 7
      %v458 = vsub.s32 0, %v457
      %v459 = vrot.slane %v454, %v458
      %v461 = vsub.f32 %v422, %v459
      %v462 = vsub.f32 %v423, %v459
      %v463 = vsub.f32 %v424, %v459
      %v464 = vsub.f32 %v425, %v459
      %v465 = vsub.f32 %v426, %v459
      %v466 = vsub.f32 %v427, %v459
      %v467 = vsub.f32 %v428, %v459
      %v468 = vsub.f32 %v429, %v459
      %v469 = vsub.f32 %v430, %v459
      %v470 = vsub.f32 %v431, %v459
      %v471 = vsub.f32 %v432, %v459
      %v472 = vsub.f32 %v433, %v459
      %v473 = vsub.f32 %v434, %v459
      %v474 = vsub.f32 %v435, %v459
      %v475 = vsub.f32 %v436, %v459
      %v476 = vsub.f32 %v437, %v459
      %v477 = vsub.f32 %v438, %v459
      %v478 = vsub.f32 %v439, %v459
      %v479 = vsub.f32 %v440, %v459
      %v480 = vsub.f32 %v441, %v459
      %v481 = vsub.f32 %v442, %v459
      %v482 = vsub.f32 %v443, %v459
      %v483 = vsub.f32 %v444, %v459
      %v484 = vsub.f32 %v445, %v459
      %v485 = vsub.f32 %v446, %v459
      %v486 = vsub.f32 %v447, %v459
      %v487 = vsub.f32 %v448, %v459
      %v488 = vsub.f32 %v449, %v459
      %v489 = vsub.f32 %v450, %v459
      %v490 = vsub.f32 %v451, %v459
      %v491 = vsub.f32 %v452, %v459
      %v492 = vsub.f32 %v453, %v459
      %v493 = vld [vmem:[%s396] sm:$0x1]
      %v495 = vlaneseq
      %v496 = vshrl.u32 %v495, 7
      %v497 = vsub.s32 0, %v496
      %v498 = vrot.slane %v493, %v497
      %v500 = vmul.f32 %v461, %v498
      %v501 = vmul.f32 %v462, %v498
      %v502 = vmul.f32 %v463, %v498
      %v503 = vmul.f32 %v464, %v498
      %v504 = vmul.f32 %v465, %v498
      %v505 = vmul.f32 %v466, %v498
      %v506 = vmul.f32 %v467, %v498
      %v507 = vmul.f32 %v468, %v498
      %v508 = vmul.f32 %v469, %v498
      %v509 = vmul.f32 %v470, %v498
      %v510 = vmul.f32 %v471, %v498
      %v511 = vmul.f32 %v472, %v498
      %v512 = vmul.f32 %v473, %v498
      %v513 = vmul.f32 %v474, %v498
      %v514 = vmul.f32 %v475, %v498
      %v515 = vmul.f32 %v476, %v498
      %v516 = vmul.f32 %v477, %v498
      %v517 = vmul.f32 %v478, %v498
      %v518 = vmul.f32 %v479, %v498
      %v519 = vmul.f32 %v480, %v498
      %v520 = vmul.f32 %v481, %v498
      %v521 = vmul.f32 %v482, %v498
      %v522 = vmul.f32 %v483, %v498
      %v523 = vmul.f32 %v484, %v498
      %v524 = vmul.f32 %v485, %v498
      %v525 = vmul.f32 %v486, %v498
      %v526 = vmul.f32 %v487, %v498
      %v527 = vmul.f32 %v488, %v498
      %v528 = vmul.f32 %v489, %v498
      %v529 = vmul.f32 %v490, %v498
      %v530 = vmul.f32 %v491, %v498
      %v531 = vmul.f32 %v492, %v498
      %v533 = vlaneseq
      %v534 = vshrl.u32 %v533, 7
      %v535 = vsub.s32 0, %v534
      %v536 = vrot.slane %v420, %v535
      %v538 = vmul.f32 %v500, %v536
      %v539 = vmul.f32 %v501, %v536
      %v540 = vmul.f32 %v502, %v536
      %v541 = vmul.f32 %v503, %v536
      %v542 = vmul.f32 %v504, %v536
      %v543 = vmul.f32 %v505, %v536
      %v544 = vmul.f32 %v506, %v536
      %v545 = vmul.f32 %v507, %v536
      %v546 = vmul.f32 %v508, %v536
      %v547 = vmul.f32 %v509, %v536
      %v548 = vmul.f32 %v510, %v536
      %v549 = vmul.f32 %v511, %v536
      %v550 = vmul.f32 %v512, %v536
      %v551 = vmul.f32 %v513, %v536
      %v552 = vmul.f32 %v514, %v536
      %v553 = vmul.f32 %v515, %v536
      %v554 = vmul.f32 %v516, %v536
      %v555 = vmul.f32 %v517, %v536
      %v556 = vmul.f32 %v518, %v536
      %v557 = vmul.f32 %v519, %v536
      %v558 = vmul.f32 %v520, %v536
      %v559 = vmul.f32 %v521, %v536
      %v560 = vmul.f32 %v522, %v536
      %v561 = vmul.f32 %v523, %v536
      %v562 = vmul.f32 %v524, %v536
      %v563 = vmul.f32 %v525, %v536
      %v564 = vmul.f32 %v526, %v536
      %v565 = vmul.f32 %v527, %v536
      %v566 = vmul.f32 %v528, %v536
      %v567 = vmul.f32 %v529, %v536
      %v568 = vmul.f32 %v530, %v536
      %v569 = vmul.f32 %v531, %v536
      %v571 = vlaneseq
      %v572 = vshrl.u32 %v571, 7
      %v573 = vsub.s32 0, %v572
      %v574 = vrot.slane %v421, %v573
      %v576 = vadd.f32 %v538, %v574
      %v577 = vadd.f32 %v539, %v574
      %v578 = vadd.f32 %v540, %v574
      %v579 = vadd.f32 %v541, %v574
      %v580 = vadd.f32 %v542, %v574
      %v581 = vadd.f32 %v543, %v574
      %v582 = vadd.f32 %v544, %v574
      %v583 = vadd.f32 %v545, %v574
      %v584 = vadd.f32 %v546, %v574
      %v585 = vadd.f32 %v547, %v574
      %v586 = vadd.f32 %v548, %v574
      %v587 = vadd.f32 %v549, %v574
      %v588 = vadd.f32 %v550, %v574
      %v589 = vadd.f32 %v551, %v574
      %v590 = vadd.f32 %v552, %v574
      %v591 = vadd.f32 %v553, %v574
      %v592 = vadd.f32 %v554, %v574
      %v593 = vadd.f32 %v555, %v574
      %v594 = vadd.f32 %v556, %v574
      %v595 = vadd.f32 %v557, %v574
      %v596 = vadd.f32 %v558, %v574
      %v597 = vadd.f32 %v559, %v574
      %v598 = vadd.f32 %v560, %v574
      %v599 = vadd.f32 %v561, %v574
      %v600 = vadd.f32 %v562, %v574
      %v601 = vadd.f32 %v563, %v574
      %v602 = vadd.f32 %v564, %v574
      %v603 = vadd.f32 %v565, %v574
      %v604 = vadd.f32 %v566, %v574
      %v605 = vadd.f32 %v567, %v574
      %v606 = vadd.f32 %v568, %v574
      %v607 = vadd.f32 %v569, %v574
      %vm608 = vcmp.ge.f32.partialorder %v576, 0.0
      %vm609 = vcmp.ge.f32.partialorder %v577, 0.0
      %vm610 = vcmp.ge.f32.partialorder %v578, 0.0
      %vm611 = vcmp.ge.f32.partialorder %v579, 0.0
      %vm612 = vcmp.ge.f32.partialorder %v580, 0.0
      %vm613 = vcmp.ge.f32.partialorder %v581, 0.0
      %vm614 = vcmp.ge.f32.partialorder %v582, 0.0
      %vm615 = vcmp.ge.f32.partialorder %v583, 0.0
      %vm616 = vcmp.ge.f32.partialorder %v584, 0.0
      %vm617 = vcmp.ge.f32.partialorder %v585, 0.0
      %vm618 = vcmp.ge.f32.partialorder %v586, 0.0
      %vm619 = vcmp.ge.f32.partialorder %v587, 0.0
      %vm620 = vcmp.ge.f32.partialorder %v588, 0.0
      %vm621 = vcmp.ge.f32.partialorder %v589, 0.0
      %vm622 = vcmp.ge.f32.partialorder %v590, 0.0
      %vm623 = vcmp.ge.f32.partialorder %v591, 0.0
      %vm624 = vcmp.ge.f32.partialorder %v592, 0.0
      %vm625 = vcmp.ge.f32.partialorder %v593, 0.0
      %vm626 = vcmp.ge.f32.partialorder %v594, 0.0
      %vm627 = vcmp.ge.f32.partialorder %v595, 0.0
      %vm628 = vcmp.ge.f32.partialorder %v596, 0.0
      %vm629 = vcmp.ge.f32.partialorder %v597, 0.0
      %vm630 = vcmp.ge.f32.partialorder %v598, 0.0
      %vm631 = vcmp.ge.f32.partialorder %v599, 0.0
      %vm632 = vcmp.ge.f32.partialorder %v600, 0.0
      %vm633 = vcmp.ge.f32.partialorder %v601, 0.0
      %vm634 = vcmp.ge.f32.partialorder %v602, 0.0
      %vm635 = vcmp.ge.f32.partialorder %v603, 0.0
      %vm636 = vcmp.ge.f32.partialorder %v604, 0.0
      %vm637 = vcmp.ge.f32.partialorder %v605, 0.0
      %vm638 = vcmp.ge.f32.partialorder %v606, 0.0
      %vm639 = vcmp.ge.f32.partialorder %v607, 0.0
      %v640 = vmul.f32 %v576, 0.2
      %v641 = vmul.f32 %v577, 0.2
      %v642 = vmul.f32 %v578, 0.2
      %v643 = vmul.f32 %v579, 0.2
      %v644 = vmul.f32 %v580, 0.2
      %v645 = vmul.f32 %v581, 0.2
      %v646 = vmul.f32 %v582, 0.2
      %v647 = vmul.f32 %v583, 0.2
      %v648 = vmul.f32 %v584, 0.2
      %v649 = vmul.f32 %v585, 0.2
      %v650 = vmul.f32 %v586, 0.2
      %v651 = vmul.f32 %v587, 0.2
      %v652 = vmul.f32 %v588, 0.2
      %v653 = vmul.f32 %v589, 0.2
      %v654 = vmul.f32 %v590, 0.2
      %v655 = vmul.f32 %v591, 0.2
      %v656 = vmul.f32 %v592, 0.2
      %v657 = vmul.f32 %v593, 0.2
      %v658 = vmul.f32 %v594, 0.2
      %v659 = vmul.f32 %v595, 0.2
      %v660 = vmul.f32 %v596, 0.2
      %v661 = vmul.f32 %v597, 0.2
      %v662 = vmul.f32 %v598, 0.2
      %v663 = vmul.f32 %v599, 0.2
      %v664 = vmul.f32 %v600, 0.2
      %v665 = vmul.f32 %v601, 0.2
      %v666 = vmul.f32 %v602, 0.2
      %v667 = vmul.f32 %v603, 0.2
      %v668 = vmul.f32 %v604, 0.2
      %v669 = vmul.f32 %v605, 0.2
      %v670 = vmul.f32 %v606, 0.2
      %v671 = vmul.f32 %v607, 0.2
      %v672 = vsel %vm608, %v576, %v640
      %v673 = vsel %vm609, %v577, %v641
      %v674 = vsel %vm610, %v578, %v642
      %v675 = vsel %vm611, %v579, %v643
      %v676 = vsel %vm612, %v580, %v644
      %v677 = vsel %vm613, %v581, %v645
      %v678 = vsel %vm614, %v582, %v646
      %v679 = vsel %vm615, %v583, %v647
      %v680 = vsel %vm616, %v584, %v648
      %v681 = vsel %vm617, %v585, %v649
      %v682 = vsel %vm618, %v586, %v650
      %v683 = vsel %vm619, %v587, %v651
      %v684 = vsel %vm620, %v588, %v652
      %v685 = vsel %vm621, %v589, %v653
      %v686 = vsel %vm622, %v590, %v654
      %v687 = vsel %vm623, %v591, %v655
      %v688 = vsel %vm624, %v592, %v656
      %v689 = vsel %vm625, %v593, %v657
      %v690 = vsel %vm626, %v594, %v658
      %v691 = vsel %vm627, %v595, %v659
      %v692 = vsel %vm628, %v596, %v660
      %v693 = vsel %vm629, %v597, %v661
      %v694 = vsel %vm630, %v598, %v662
      %v695 = vsel %vm631, %v599, %v663
      %v696 = vsel %vm632, %v600, %v664
      %v697 = vsel %vm633, %v601, %v665
      %v698 = vsel %vm634, %v602, %v666
      %v699 = vsel %vm635, %v603, %v667
      %v700 = vsel %vm636, %v604, %v668
      %v701 = vsel %vm637, %v605, %v669
      %v702 = vsel %vm638, %v606, %v670
      %v703 = vsel %vm639, %v607, %v671
      %v704 = vld [vmem:[%s5] sm:$0xff]
      %v705 = vld [vmem:[%s5 + $0x8] sm:$0xff]
      %v706 = vld [vmem:[%s5 + $0x10] sm:$0xff]
      %v707 = vld [vmem:[%s5 + $0x18] sm:$0xff]
      %v708 = vld [vmem:[%s5 + $0x20] sm:$0xff]
      %v709 = vld [vmem:[%s5 + $0x28] sm:$0xff]
      %v710 = vld [vmem:[%s5 + $0x30] sm:$0xff]
      %v711 = vld [vmem:[%s5 + $0x38] sm:$0xff]
      %v712 = vld [vmem:[%s5 + $0x40] sm:$0xff]
      %v713 = vld [vmem:[%s5 + $0x48] sm:$0xff]
      %v714 = vld [vmem:[%s5 + $0x50] sm:$0xff]
      %v715 = vld [vmem:[%s5 + $0x58] sm:$0xff]
      %v716 = vld [vmem:[%s5 + $0x60] sm:$0xff]
      %v717 = vld [vmem:[%s5 + $0x68] sm:$0xff]
      %v718 = vld [vmem:[%s5 + $0x70] sm:$0xff]
      %v719 = vld [vmem:[%s5 + $0x78] sm:$0xff]
      %v720 = vld [vmem:[%s6] sm:$0x1]
      %v722 = vlaneseq
      %v723 = vshrl.u32 %v722, 7
      %v724 = vsub.s32 0, %v723
      %v725 = vrot.slane %v720, %v724
      %727 = vmatprep.subr.mxu0 0.0
      %728 = vmatpush1.msra.mxu0 %v719
      %729 = vmatprep.subr.mxu0 0.0
      %730 = vmatpush1.msra.mxu0 %v718
      %731 = vmatprep.subr.mxu0 0.0
      %732 = vmatpush1.msra.mxu0 %v717
      %733 = vmatprep.subr.mxu0 0.0
      %734 = vmatpush1.msra.mxu0 %v716
      %735 = vmatprep.subr.mxu0 0.0
      %736 = vmatpush1.msra.mxu0 %v715
      %737 = vmatprep.subr.mxu0 0.0
      %738 = vmatpush1.msra.mxu0 %v714
      %739 = vmatprep.subr.mxu0 0.0
      %740 = vmatpush1.msra.mxu0 %v713
      %741 = vmatprep.subr.mxu0 0.0
      %742 = vmatpush1.msra.mxu0 %v712
      %743 = vmatprep.subr.mxu0 0.0
      %744 = vmatpush1.msra.mxu0 %v711
      %745 = vmatprep.subr.mxu0 0.0
      %746 = vmatpush1.msra.mxu0 %v710
      %747 = vmatprep.subr.mxu0 0.0
      %748 = vmatpush1.msra.mxu0 %v709
      %749 = vmatprep.subr.mxu0 0.0
      %750 = vmatpush1.msra.mxu0 %v708
      %751 = vmatprep.subr.mxu0 0.0
      %752 = vmatpush1.msra.mxu0 %v707
      %753 = vmatprep.subr.mxu0 0.0
      %754 = vmatpush1.msra.mxu0 %v706
      %755 = vmatprep.subr.mxu0 0.0
      %756 = vmatpush1.msra.mxu0 %v705
      %757 = vmatprep.subr.mxu0 0.0
      %758 = vmatpush1.msra.mxu0 %v704
      %759 = vmatprep.subr.mxu0 0.0
      %760 = vmatpush2.msra.mxu0 0.0
      %761 = vmatprep.subr.mxu0 0.0
      %762 = vmatpush2.msra.mxu0 0.0
      %763 = vmatprep.subr.mxu0 0.0
      %764 = vmatpush2.msra.mxu0 0.0
      %765 = vmatprep.subr.mxu0 0.0
      %766 = vmatpush2.msra.mxu0 0.0
      %767 = vmatprep.subr.mxu0 0.0
      %768 = vmatpush2.msra.mxu0 0.0
      %769 = vmatprep.subr.mxu0 0.0
      %770 = vmatpush2.msra.mxu0 0.0
      %771 = vmatprep.subr.mxu0 0.0
      %772 = vmatpush2.msra.mxu0 0.0
      %773 = vmatprep.subr.mxu0 0.0
      %774 = vmatpush2.msra.mxu0 0.0
      %775 = vmatprep.subr.mxu0 0.0
      %776 = vmatpush2.msra.mxu0 0.0
      %777 = vmatprep.subr.mxu0 0.0
      %778 = vmatpush2.msra.mxu0 0.0
      %779 = vmatprep.subr.mxu0 0.0
      %780 = vmatpush2.msra.mxu0 0.0
      %781 = vmatprep.subr.mxu0 0.0
      %782 = vmatpush2.msra.mxu0 0.0
      %783 = vmatprep.subr.mxu0 0.0
      %784 = vmatpush2.msra.mxu0 0.0
      %785 = vmatprep.subr.mxu0 0.0
      %786 = vmatpush2.msra.mxu0 0.0
      %787 = vmatprep.subr.mxu0 0.0
      %788 = vmatpush2.msra.mxu0 0.0
      %789 = vmatprep.subr.mxu0 0.0
      %790 = vmatpush2.msra.mxu0 0.0
      %791 = vmatprep.mubr.f32.mxu0 0.0
      %792 = vmatmul.mubr.f32.gmra.mxu0 %v672
      %v793 = vpop.f32.mrf.mxu0
      %v794 = vadd.f32 %v725, %v793
      %v795 = vpop.f32.mrf.mxu0
      %796 = vmatprep.mubr.f32.mxu0 0.0
      %797 = vmatmul.mubr.f32.gmra.mxu0 %v673
      %v798 = vpop.f32.mrf.mxu0
      %v799 = vadd.f32 %v725, %v798
      %v800 = vpop.f32.mrf.mxu0
      %801 = vmatprep.mubr.f32.mxu0 0.0
      %802 = vmatmul.mubr.f32.gmra.mxu0 %v674
      %v803 = vpop.f32.mrf.mxu0
      %v804 = vadd.f32 %v725, %v803
      %v805 = vpop.f32.mrf.mxu0
      %806 = vmatprep.mubr.f32.mxu0 0.0
      %807 = vmatmul.mubr.f32.gmra.mxu0 %v675
      %v808 = vpop.f32.mrf.mxu0
      %v809 = vadd.f32 %v725, %v808
      %v810 = vpop.f32.mrf.mxu0
      %811 = vmatprep.mubr.f32.mxu0 0.0
      %812 = vmatmul.mubr.f32.gmra.mxu0 %v676
      %v813 = vpop.f32.mrf.mxu0
      %v814 = vadd.f32 %v725, %v813
      %v815 = vpop.f32.mrf.mxu0
      %816 = vmatprep.mubr.f32.mxu0 0.0
      %817 = vmatmul.mubr.f32.gmra.mxu0 %v677
      %v818 = vpop.f32.mrf.mxu0
      %v819 = vadd.f32 %v725, %v818
      %v820 = vpop.f32.mrf.mxu0
      %821 = vmatprep.mubr.f32.mxu0 0.0
      %822 = vmatmul.mubr.f32.gmra.mxu0 %v678
      %v823 = vpop.f32.mrf.mxu0
      %v824 = vadd.f32 %v725, %v823
      %v825 = vpop.f32.mrf.mxu0
      %826 = vmatprep.mubr.f32.mxu0 0.0
      %827 = vmatmul.mubr.f32.gmra.mxu0 %v679
      %v828 = vpop.f32.mrf.mxu0
      %v829 = vadd.f32 %v725, %v828
      %v830 = vpop.f32.mrf.mxu0
      %831 = vmatprep.mubr.f32.mxu0 0.0
      %832 = vmatmul.mubr.f32.gmra.mxu0 %v680
      %v833 = vpop.f32.mrf.mxu0
      %v834 = vadd.f32 %v725, %v833
      %v835 = vpop.f32.mrf.mxu0
      %836 = vmatprep.mubr.f32.mxu0 0.0
      %837 = vmatmul.mubr.f32.gmra.mxu0 %v681
      %v838 = vpop.f32.mrf.mxu0
      %v839 = vadd.f32 %v725, %v838
      %v840 = vpop.f32.mrf.mxu0
      %841 = vmatprep.mubr.f32.mxu0 0.0
      %842 = vmatmul.mubr.f32.gmra.mxu0 %v682
      %v843 = vpop.f32.mrf.mxu0
      %v844 = vadd.f32 %v725, %v843
      %v845 = vpop.f32.mrf.mxu0
      %846 = vmatprep.mubr.f32.mxu0 0.0
      %847 = vmatmul.mubr.f32.gmra.mxu0 %v683
      %v848 = vpop.f32.mrf.mxu0
      %v849 = vadd.f32 %v725, %v848
      %v850 = vpop.f32.mrf.mxu0
      %851 = vmatprep.mubr.f32.mxu0 0.0
      %852 = vmatmul.mubr.f32.gmra.mxu0 %v684
      %v853 = vpop.f32.mrf.mxu0
      %v854 = vadd.f32 %v725, %v853
      %v855 = vpop.f32.mrf.mxu0
      %856 = vmatprep.mubr.f32.mxu0 0.0
      %857 = vmatmul.mubr.f32.gmra.mxu0 %v685
      %v858 = vpop.f32.mrf.mxu0
      %v859 = vadd.f32 %v725, %v858
      %v860 = vpop.f32.mrf.mxu0
      %861 = vmatprep.mubr.f32.mxu0 0.0
      %862 = vmatmul.mubr.f32.gmra.mxu0 %v686
      %v863 = vpop.f32.mrf.mxu0
      %v864 = vadd.f32 %v725, %v863
      %v865 = vpop.f32.mrf.mxu0
      %866 = vmatprep.mubr.f32.mxu0 0.0
      %867 = vmatmul.mubr.f32.gmra.mxu0 %v687
      %v868 = vpop.f32.mrf.mxu0
      %v869 = vadd.f32 %v725, %v868
      %v870 = vpop.f32.mrf.mxu0
      %871 = vmatprep.mubr.f32.mxu0 0.0
      %872 = vmatmul.mubr.f32.gmra.mxu0 %v688
      %v873 = vpop.f32.mrf.mxu0
      %v874 = vadd.f32 %v725, %v873
      %v875 = vpop.f32.mrf.mxu0
      %876 = vmatprep.mubr.f32.mxu0 0.0
      %877 = vmatmul.mubr.f32.gmra.mxu0 %v689
      %v878 = vpop.f32.mrf.mxu0
      %v879 = vadd.f32 %v725, %v878
      %v880 = vpop.f32.mrf.mxu0
      %881 = vmatprep.mubr.f32.mxu0 0.0
      %882 = vmatmul.mubr.f32.gmra.mxu0 %v690
      %v883 = vpop.f32.mrf.mxu0
      %v884 = vadd.f32 %v725, %v883
      %v885 = vpop.f32.mrf.mxu0
      %886 = vmatprep.mubr.f32.mxu0 0.0
      %887 = vmatmul.mubr.f32.gmra.mxu0 %v691
      %v888 = vpop.f32.mrf.mxu0
      %v889 = vadd.f32 %v725, %v888
      %v890 = vpop.f32.mrf.mxu0
      %891 = vmatprep.mubr.f32.mxu0 0.0
      %892 = vmatmul.mubr.f32.gmra.mxu0 %v692
      %v893 = vpop.f32.mrf.mxu0
      %v894 = vadd.f32 %v725, %v893
      %v895 = vpop.f32.mrf.mxu0
      %896 = vmatprep.mubr.f32.mxu0 0.0
      %897 = vmatmul.mubr.f32.gmra.mxu0 %v693
      %v898 = vpop.f32.mrf.mxu0
      %v899 = vadd.f32 %v725, %v898
      %v900 = vpop.f32.mrf.mxu0
      %901 = vmatprep.mubr.f32.mxu0 0.0
      %902 = vmatmul.mubr.f32.gmra.mxu0 %v694
      %v903 = vpop.f32.mrf.mxu0
      %v904 = vadd.f32 %v725, %v903
      %v905 = vpop.f32.mrf.mxu0
      %906 = vmatprep.mubr.f32.mxu0 0.0
      %907 = vmatmul.mubr.f32.gmra.mxu0 %v695
      %v908 = vpop.f32.mrf.mxu0
      %v909 = vadd.f32 %v725, %v908
      %v910 = vpop.f32.mrf.mxu0
      %911 = vmatprep.mubr.f32.mxu0 0.0
      %912 = vmatmul.mubr.f32.gmra.mxu0 %v696
      %v913 = vpop.f32.mrf.mxu0
      %v914 = vadd.f32 %v725, %v913
      %v915 = vpop.f32.mrf.mxu0
      %916 = vmatprep.mubr.f32.mxu0 0.0
      %917 = vmatmul.mubr.f32.gmra.mxu0 %v697
      %v918 = vpop.f32.mrf.mxu0
      %v919 = vadd.f32 %v725, %v918
      %v920 = vpop.f32.mrf.mxu0
      %921 = vmatprep.mubr.f32.mxu0 0.0
      %922 = vmatmul.mubr.f32.gmra.mxu0 %v698
      %v923 = vpop.f32.mrf.mxu0
      %v924 = vadd.f32 %v725, %v923
      %v925 = vpop.f32.mrf.mxu0
      %926 = vmatprep.mubr.f32.mxu0 0.0
      %927 = vmatmul.mubr.f32.gmra.mxu0 %v699
      %v928 = vpop.f32.mrf.mxu0
      %v929 = vadd.f32 %v725, %v928
      %v930 = vpop.f32.mrf.mxu0
      %931 = vmatprep.mubr.f32.mxu0 0.0
      %932 = vmatmul.mubr.f32.gmra.mxu0 %v700
      %v933 = vpop.f32.mrf.mxu0
      %v934 = vadd.f32 %v725, %v933
      %v935 = vpop.f32.mrf.mxu0
      %936 = vmatprep.mubr.f32.mxu0 0.0
      %937 = vmatmul.mubr.f32.gmra.mxu0 %v701
      %v938 = vpop.f32.mrf.mxu0
      %v939 = vadd.f32 %v725, %v938
      %v940 = vpop.f32.mrf.mxu0
      %941 = vmatprep.mubr.f32.mxu0 0.0
      %942 = vmatmul.mubr.f32.gmra.mxu0 %v702
      %v943 = vpop.f32.mrf.mxu0
      %v944 = vadd.f32 %v725, %v943
      %v945 = vpop.f32.mrf.mxu0
      %946 = vmatprep.mubr.f32.mxu0 0.0
      %947 = vmatmul.mubr.f32.gmra.mxu0 %v703
      %v948 = vpop.f32.mrf.mxu0
      %v949 = vadd.f32 %v725, %v948
      %v950 = vpop.f32.mrf.mxu0
      %951 = vdwg.mxu0
      %952 = vst [vmem:[%s411] sm:$0xff] %v794
      %953 = vst [vmem:[%s411 + $0x8] sm:$0xff] %v799
      %954 = vst [vmem:[%s411 + $0x10] sm:$0xff] %v804
      %955 = vst [vmem:[%s411 + $0x18] sm:$0xff] %v809
      %956 = vst [vmem:[%s411 + $0x20] sm:$0xff] %v814
      %957 = vst [vmem:[%s411 + $0x28] sm:$0xff] %v819
      %958 = vst [vmem:[%s411 + $0x30] sm:$0xff] %v824
      %959 = vst [vmem:[%s411 + $0x38] sm:$0xff] %v829
      %960 = vst [vmem:[%s411 + $0x40] sm:$0xff] %v834
      %961 = vst [vmem:[%s411 + $0x48] sm:$0xff] %v839
      %962 = vst [vmem:[%s411 + $0x50] sm:$0xff] %v844
      %963 = vst [vmem:[%s411 + $0x58] sm:$0xff] %v849
      %964 = vst [vmem:[%s411 + $0x60] sm:$0xff] %v854
      %965 = vst [vmem:[%s411 + $0x68] sm:$0xff] %v859
      %966 = vst [vmem:[%s411 + $0x70] sm:$0xff] %v864
      %967 = vst [vmem:[%s411 + $0x78] sm:$0xff] %v869
      %968 = vst [vmem:[%s411 + $0x80] sm:$0xff] %v874
      %969 = vst [vmem:[%s411 + $0x88] sm:$0xff] %v879
      %970 = vst [vmem:[%s411 + $0x90] sm:$0xff] %v884
      %971 = vst [vmem:[%s411 + $0x98] sm:$0xff] %v889
      %972 = vst [vmem:[%s411 + $0xa0] sm:$0xff] %v894
      %973 = vst [vmem:[%s411 + $0xa8] sm:$0xff] %v899
      %974 = vst [vmem:[%s411 + $0xb0] sm:$0xff] %v904
      %975 = vst [vmem:[%s411 + $0xb8] sm:$0xff] %v909
      %976 = vst [vmem:[%s411 + $0xc0] sm:$0xff] %v914
      %977 = vst [vmem:[%s411 + $0xc8] sm:$0xff] %v919
      %978 = vst [vmem:[%s411 + $0xd0] sm:$0xff] %v924
      %979 = vst [vmem:[%s411 + $0xd8] sm:$0xff] %v929
      %980 = vst [vmem:[%s411 + $0xe0] sm:$0xff] %v934
      %981 = vst [vmem:[%s411 + $0xe8] sm:$0xff] %v939
      %982 = vst [vmem:[%s411 + $0xf0] sm:$0xff] %v944
      %983 = vst [vmem:[%s411 + $0xf8] sm:$0xff] %v949
      %v984 = vlaneseq
      %v985 = vshrl.u32 %v984, 7
      %v986 = vadd.s32 %v985, 8
      %v987 = vadd.s32 %v985, 16
      %v988 = vadd.s32 %v985, 24
      %v989 = vadd.s32 %v985, 32
      %v990 = vadd.s32 %v985, 40
      %v991 = vadd.s32 %v985, 48
      %v992 = vadd.s32 %v985, 56
      %v993 = vadd.s32 %v985, 64
      %v994 = vadd.s32 %v985, 72
      %v995 = vadd.s32 %v985, 80
      %v996 = vadd.s32 %v985, 88
      %v997 = vadd.s32 %v985, 96
      %v998 = vadd.s32 %v985, 104
      %v999 = vadd.s32 %v985, 112
      %v1000 = vadd.s32 %v985, 120
      %v1001 = vadd.s32 %v985, 128
      %v1002 = vadd.s32 %v985, 136
      %v1003 = vadd.s32 %v985, 144
      %v1004 = vadd.s32 %v985, 152
      %v1005 = vadd.s32 %v985, 160
      %v1006 = vadd.s32 %v985, 168
      %v1007 = vadd.s32 %v985, 176
      %v1008 = vadd.s32 %v985, 184
      %v1009 = vadd.s32 %v985, 192
      %v1010 = vadd.s32 %v985, 200
      %v1011 = vadd.s32 %v985, 208
      %v1012 = vadd.s32 %v985, 216
      %v1013 = vadd.s32 %v985, 224
      %v1014 = vadd.s32 %v985, 232
      %v1015 = vadd.s32 %v985, 240
      %v1016 = vadd.s32 %v985, 248
      %s1017 = smul.u32 %s24, 256
      %v1018 = vstv %s1017
      %v1019 = vadd.s32 %v1018, %v985
      %v1020 = vadd.s32 %v1018, %v986
      %v1021 = vadd.s32 %v1018, %v987
      %v1022 = vadd.s32 %v1018, %v988
      %v1023 = vadd.s32 %v1018, %v989
      %v1024 = vadd.s32 %v1018, %v990
      %v1025 = vadd.s32 %v1018, %v991
      %v1026 = vadd.s32 %v1018, %v992
      %v1027 = vadd.s32 %v1018, %v993
      %v1028 = vadd.s32 %v1018, %v994
      %v1029 = vadd.s32 %v1018, %v995
      %v1030 = vadd.s32 %v1018, %v996
      %v1031 = vadd.s32 %v1018, %v997
      %v1032 = vadd.s32 %v1018, %v998
      %v1033 = vadd.s32 %v1018, %v999
      %v1034 = vadd.s32 %v1018, %v1000
      %v1035 = vadd.s32 %v1018, %v1001
      %v1036 = vadd.s32 %v1018, %v1002
      %v1037 = vadd.s32 %v1018, %v1003
      %v1038 = vadd.s32 %v1018, %v1004
      %v1039 = vadd.s32 %v1018, %v1005
      %v1040 = vadd.s32 %v1018, %v1006
      %v1041 = vadd.s32 %v1018, %v1007
      %v1042 = vadd.s32 %v1018, %v1008
      %v1043 = vadd.s32 %v1018, %v1009
      %v1044 = vadd.s32 %v1018, %v1010
      %v1045 = vadd.s32 %v1018, %v1011
      %v1046 = vadd.s32 %v1018, %v1012
      %v1047 = vadd.s32 %v1018, %v1013
      %v1048 = vadd.s32 %v1018, %v1014
      %v1049 = vadd.s32 %v1018, %v1015
      %v1050 = vadd.s32 %v1018, %v1016
      %vm1051 = vcmp.lt.s32.totalorder %v1019, 256
      %vm1052 = vcmp.lt.s32.totalorder %v1020, 256
      %vm1053 = vcmp.lt.s32.totalorder %v1021, 256
      %vm1054 = vcmp.lt.s32.totalorder %v1022, 256
      %vm1055 = vcmp.lt.s32.totalorder %v1023, 256
      %vm1056 = vcmp.lt.s32.totalorder %v1024, 256
      %vm1057 = vcmp.lt.s32.totalorder %v1025, 256
      %vm1058 = vcmp.lt.s32.totalorder %v1026, 256
      %vm1059 = vcmp.lt.s32.totalorder %v1027, 256
      %vm1060 = vcmp.lt.s32.totalorder %v1028, 256
      %vm1061 = vcmp.lt.s32.totalorder %v1029, 256
      %vm1062 = vcmp.lt.s32.totalorder %v1030, 256
      %vm1063 = vcmp.lt.s32.totalorder %v1031, 256
      %vm1064 = vcmp.lt.s32.totalorder %v1032, 256
      %vm1065 = vcmp.lt.s32.totalorder %v1033, 256
      %vm1066 = vcmp.lt.s32.totalorder %v1034, 256
      %vm1067 = vcmp.lt.s32.totalorder %v1035, 256
      %vm1068 = vcmp.lt.s32.totalorder %v1036, 256
      %vm1069 = vcmp.lt.s32.totalorder %v1037, 256
      %vm1070 = vcmp.lt.s32.totalorder %v1038, 256
      %vm1071 = vcmp.lt.s32.totalorder %v1039, 256
      %vm1072 = vcmp.lt.s32.totalorder %v1040, 256
      %vm1073 = vcmp.lt.s32.totalorder %v1041, 256
      %vm1074 = vcmp.lt.s32.totalorder %v1042, 256
      %vm1075 = vcmp.lt.s32.totalorder %v1043, 256
      %vm1076 = vcmp.lt.s32.totalorder %v1044, 256
      %vm1077 = vcmp.lt.s32.totalorder %v1045, 256
      %vm1078 = vcmp.lt.s32.totalorder %v1046, 256
      %vm1079 = vcmp.lt.s32.totalorder %v1047, 256
      %vm1080 = vcmp.lt.s32.totalorder %v1048, 256
      %vm1081 = vcmp.lt.s32.totalorder %v1049, 256
      %vm1082 = vcmp.lt.s32.totalorder %v1050, 256
      %v1083 = vsel %vm1051, 1, 0
      %v1084 = vsel %vm1052, 1, 0
      %v1085 = vsel %vm1053, 1, 0
      %v1086 = vsel %vm1054, 1, 0
      %v1087 = vsel %vm1055, 1, 0
      %v1088 = vsel %vm1056, 1, 0
      %v1089 = vsel %vm1057, 1, 0
      %v1090 = vsel %vm1058, 1, 0
      %v1091 = vsel %vm1059, 1, 0
      %v1092 = vsel %vm1060, 1, 0
      %v1093 = vsel %vm1061, 1, 0
      %v1094 = vsel %vm1062, 1, 0
      %v1095 = vsel %vm1063, 1, 0
      %v1096 = vsel %vm1064, 1, 0
      %v1097 = vsel %vm1065, 1, 0
      %v1098 = vsel %vm1066, 1, 0
      %v1099 = vsel %vm1067, 1, 0
      %v1100 = vsel %vm1068, 1, 0
      %v1101 = vsel %vm1069, 1, 0
      %v1102 = vsel %vm1070, 1, 0
      %v1103 = vsel %vm1071, 1, 0
      %v1104 = vsel %vm1072, 1, 0
      %v1105 = vsel %vm1073, 1, 0
      %v1106 = vsel %vm1074, 1, 0
      %v1107 = vsel %vm1075, 1, 0
      %v1108 = vsel %vm1076, 1, 0
      %v1109 = vsel %vm1077, 1, 0
      %v1110 = vsel %vm1078, 1, 0
      %v1111 = vsel %vm1079, 1, 0
      %v1112 = vsel %vm1080, 1, 0
      %v1113 = vsel %vm1081, 1, 0
      %v1114 = vsel %vm1082, 1, 0
      %vm1115 = vcmp.eq.s32.totalorder %v1083, 1
      %vm1116 = vcmp.eq.s32.totalorder %v1084, 1
      %vm1117 = vcmp.eq.s32.totalorder %v1085, 1
      %vm1118 = vcmp.eq.s32.totalorder %v1086, 1
      %vm1119 = vcmp.eq.s32.totalorder %v1087, 1
      %vm1120 = vcmp.eq.s32.totalorder %v1088, 1
      %vm1121 = vcmp.eq.s32.totalorder %v1089, 1
      %vm1122 = vcmp.eq.s32.totalorder %v1090, 1
      %vm1123 = vcmp.eq.s32.totalorder %v1091, 1
      %vm1124 = vcmp.eq.s32.totalorder %v1092, 1
      %vm1125 = vcmp.eq.s32.totalorder %v1093, 1
      %vm1126 = vcmp.eq.s32.totalorder %v1094, 1
      %vm1127 = vcmp.eq.s32.totalorder %v1095, 1
      %vm1128 = vcmp.eq.s32.totalorder %v1096, 1
      %vm1129 = vcmp.eq.s32.totalorder %v1097, 1
      %vm1130 = vcmp.eq.s32.totalorder %v1098, 1
      %vm1131 = vcmp.eq.s32.totalorder %v1099, 1
      %vm1132 = vcmp.eq.s32.totalorder %v1100, 1
      %vm1133 = vcmp.eq.s32.totalorder %v1101, 1
      %vm1134 = vcmp.eq.s32.totalorder %v1102, 1
      %vm1135 = vcmp.eq.s32.totalorder %v1103, 1
      %vm1136 = vcmp.eq.s32.totalorder %v1104, 1
      %vm1137 = vcmp.eq.s32.totalorder %v1105, 1
      %vm1138 = vcmp.eq.s32.totalorder %v1106, 1
      %vm1139 = vcmp.eq.s32.totalorder %v1107, 1
      %vm1140 = vcmp.eq.s32.totalorder %v1108, 1
      %vm1141 = vcmp.eq.s32.totalorder %v1109, 1
      %vm1142 = vcmp.eq.s32.totalorder %v1110, 1
      %vm1143 = vcmp.eq.s32.totalorder %v1111, 1
      %vm1144 = vcmp.eq.s32.totalorder %v1112, 1
      %vm1145 = vcmp.eq.s32.totalorder %v1113, 1
      %vm1146 = vcmp.eq.s32.totalorder %v1114, 1
      %v1147 = vsel %vm1115, %v794, 0.0
      %v1148 = vsel %vm1116, %v799, 0.0
      %v1149 = vsel %vm1117, %v804, 0.0
      %v1150 = vsel %vm1118, %v809, 0.0
      %v1151 = vsel %vm1119, %v814, 0.0
      %v1152 = vsel %vm1120, %v819, 0.0
      %v1153 = vsel %vm1121, %v824, 0.0
      %v1154 = vsel %vm1122, %v829, 0.0
      %v1155 = vsel %vm1123, %v834, 0.0
      %v1156 = vsel %vm1124, %v839, 0.0
      %v1157 = vsel %vm1125, %v844, 0.0
      %v1158 = vsel %vm1126, %v849, 0.0
      %v1159 = vsel %vm1127, %v854, 0.0
      %v1160 = vsel %vm1128, %v859, 0.0
      %v1161 = vsel %vm1129, %v864, 0.0
      %v1162 = vsel %vm1130, %v869, 0.0
      %v1163 = vsel %vm1131, %v874, 0.0
      %v1164 = vsel %vm1132, %v879, 0.0
      %v1165 = vsel %vm1133, %v884, 0.0
      %v1166 = vsel %vm1134, %v889, 0.0
      %v1167 = vsel %vm1135, %v894, 0.0
      %v1168 = vsel %vm1136, %v899, 0.0
      %v1169 = vsel %vm1137, %v904, 0.0
      %v1170 = vsel %vm1138, %v909, 0.0
      %v1171 = vsel %vm1139, %v914, 0.0
      %v1172 = vsel %vm1140, %v919, 0.0
      %v1173 = vsel %vm1141, %v924, 0.0
      %v1174 = vsel %vm1142, %v929, 0.0
      %v1175 = vsel %vm1143, %v934, 0.0
      %v1176 = vsel %vm1144, %v939, 0.0
      %v1177 = vsel %vm1145, %v944, 0.0
      %v1178 = vsel %vm1146, %v949, 0.0
      %v1179 = vadd.f32 %v1147, %v1148
      %v1180 = vadd.f32 %v1179, %v1149
      %v1181 = vadd.f32 %v1180, %v1150
      %v1182 = vadd.f32 %v1181, %v1151
      %v1183 = vadd.f32 %v1182, %v1152
      %v1184 = vadd.f32 %v1183, %v1153
      %v1185 = vadd.f32 %v1184, %v1154
      %v1186 = vadd.f32 %v1185, %v1155
      %v1187 = vadd.f32 %v1186, %v1156
      %v1188 = vadd.f32 %v1187, %v1157
      %v1189 = vadd.f32 %v1188, %v1158
      %v1190 = vadd.f32 %v1189, %v1159
      %v1191 = vadd.f32 %v1190, %v1160
      %v1192 = vadd.f32 %v1191, %v1161
      %v1193 = vadd.f32 %v1192, %v1162
      %v1194 = vadd.f32 %v1193, %v1163
      %v1195 = vadd.f32 %v1194, %v1164
      %v1196 = vadd.f32 %v1195, %v1165
      %v1197 = vadd.f32 %v1196, %v1166
      %v1198 = vadd.f32 %v1197, %v1167
      %v1199 = vadd.f32 %v1198, %v1168
      %v1200 = vadd.f32 %v1199, %v1169
      %v1201 = vadd.f32 %v1200, %v1170
      %v1202 = vadd.f32 %v1201, %v1171
      %v1203 = vadd.f32 %v1202, %v1172
      %v1204 = vadd.f32 %v1203, %v1173
      %v1205 = vadd.f32 %v1204, %v1174
      %v1206 = vadd.f32 %v1205, %v1175
      %v1207 = vadd.f32 %v1206, %v1176
      %v1208 = vadd.f32 %v1207, %v1177
      %v1209 = vadd.f32 %v1208, %v1178
      %v1210 = vrot.slane %v1209, 4
      %v1211 = vadd.f32 %v1209, %v1210
      %v1212 = vrot.slane %v1211, 2
      %v1213 = vadd.f32 %v1211, %v1212
      %v1214 = vrot.slane %v1213, 1
      %v1215 = vadd.f32 %v1213, %v1214
      %v1216 = vmul.f32 %v1147, %v794
      %v1217 = vmul.f32 %v1148, %v799
      %v1218 = vmul.f32 %v1149, %v804
      %v1219 = vmul.f32 %v1150, %v809
      %v1220 = vmul.f32 %v1151, %v814
      %v1221 = vmul.f32 %v1152, %v819
      %v1222 = vmul.f32 %v1153, %v824
      %v1223 = vmul.f32 %v1154, %v829
      %v1224 = vmul.f32 %v1155, %v834
      %v1225 = vmul.f32 %v1156, %v839
      %v1226 = vmul.f32 %v1157, %v844
      %v1227 = vmul.f32 %v1158, %v849
      %v1228 = vmul.f32 %v1159, %v854
      %v1229 = vmul.f32 %v1160, %v859
      %v1230 = vmul.f32 %v1161, %v864
      %v1231 = vmul.f32 %v1162, %v869
      %v1232 = vmul.f32 %v1163, %v874
      %v1233 = vmul.f32 %v1164, %v879
      %v1234 = vmul.f32 %v1165, %v884
      %v1235 = vmul.f32 %v1166, %v889
      %v1236 = vmul.f32 %v1167, %v894
      %v1237 = vmul.f32 %v1168, %v899
      %v1238 = vmul.f32 %v1169, %v904
      %v1239 = vmul.f32 %v1170, %v909
      %v1240 = vmul.f32 %v1171, %v914
      %v1241 = vmul.f32 %v1172, %v919
      %v1242 = vmul.f32 %v1173, %v924
      %v1243 = vmul.f32 %v1174, %v929
      %v1244 = vmul.f32 %v1175, %v934
      %v1245 = vmul.f32 %v1176, %v939
      %v1246 = vmul.f32 %v1177, %v944
      %v1247 = vmul.f32 %v1178, %v949
      %v1248 = vadd.f32 %v1216, %v1217
      %v1249 = vadd.f32 %v1248, %v1218
      %v1250 = vadd.f32 %v1249, %v1219
      %v1251 = vadd.f32 %v1250, %v1220
      %v1252 = vadd.f32 %v1251, %v1221
      %v1253 = vadd.f32 %v1252, %v1222
      %v1254 = vadd.f32 %v1253, %v1223
      %v1255 = vadd.f32 %v1254, %v1224
      %v1256 = vadd.f32 %v1255, %v1225
      %v1257 = vadd.f32 %v1256, %v1226
      %v1258 = vadd.f32 %v1257, %v1227
      %v1259 = vadd.f32 %v1258, %v1228
      %v1260 = vadd.f32 %v1259, %v1229
      %v1261 = vadd.f32 %v1260, %v1230
      %v1262 = vadd.f32 %v1261, %v1231
      %v1263 = vadd.f32 %v1262, %v1232
      %v1264 = vadd.f32 %v1263, %v1233
      %v1265 = vadd.f32 %v1264, %v1234
      %v1266 = vadd.f32 %v1265, %v1235
      %v1267 = vadd.f32 %v1266, %v1236
      %v1268 = vadd.f32 %v1267, %v1237
      %v1269 = vadd.f32 %v1268, %v1238
      %v1270 = vadd.f32 %v1269, %v1239
      %v1271 = vadd.f32 %v1270, %v1240
      %v1272 = vadd.f32 %v1271, %v1241
      %v1273 = vadd.f32 %v1272, %v1242
      %v1274 = vadd.f32 %v1273, %v1243
      %v1275 = vadd.f32 %v1274, %v1244
      %v1276 = vadd.f32 %v1275, %v1245
      %v1277 = vadd.f32 %v1276, %v1246
      %v1278 = vadd.f32 %v1277, %v1247
      %v1279 = vrot.slane %v1278, 4
      %v1280 = vadd.f32 %v1278, %v1279
      %v1281 = vrot.slane %v1280, 2
      %v1282 = vadd.f32 %v1280, %v1281
      %v1283 = vrot.slane %v1282, 1
      %v1284 = vadd.f32 %v1282, %v1283
      %vm1285 = vcmask 1040384
      %v1286 = vsel %vm1285, %v1215, %v1284
      %1287 = vst [vmem:[%s419] sm:$0x3] %v1286
      %s1288 = smul.u32 32, %s24
      %p1289 = scmp.lt.s32.totalorder %s25, 1
      %s1290 = scalar_select %p1289, %s25, 1
      %p1291 = scmp.lt.s32.totalorder %s1288, 31
      %s1292 = scalar_select %p1291, %s1288, 31
      %s1293 = smul.addr %s1290, 32
      %s1294 = sadd.s32 %s1292, %s1293
      %s1295 = smul.addr %s1294, 8
      %s1296 = scalar_lea.vmem %s7, %s1295
      %p1297 = scmp.lt.s32.totalorder %s25, 1
      %s1298 = scalar_select %p1297, %s25, 1
      %p1299 = scmp.lt.s32.totalorder %s24, 0
      %s1300 = scalar_select %p1299, %s24, 0
      %s1301 = sadd.s32 %s1300, %s1298
      %s1302 = smul.addr %s1301, 2
      %s1303 = scalar_lea.vmem %s8, %s1302
      // Predicated region
      $region49: #{spade_block.2} parent=47 // pred_check
        %p1304 = pneg %p226
      $region50: #{spade_block.2} parent=47 // pred_check_branch
        %1306 = sbr.rel (%p1304) target = $region52
      $region51: #{spade_block.2} parent=47 // pred_region
        %s1307 = smul.u32 32, %s24
      $region52: #{spade_block.2} parent=47 // pred_fallthru
        _
      // Predicated region
      $region53: #{spade_block.2} parent=47 // pred_check
        %p1308 = pneg %p254
      $region54: #{spade_block.2} parent=47 // pred_check_branch
        %1310 = sbr.rel (%p1308) target = $region56
      $region55: #{spade_block.2} parent=47 // pred_region
        _
      $region56: #{spade_block.2} parent=47 // pred_fallthru
        _
    $region48: #{spade_block.2} parent=5 // pred_fallthru
      _
    %p1311 = scmp.le.s32.totalorder 2, %s15
    // Predicated region
    $region57: #{spade_block.2} parent=5 // pred_check
      %p1312 = pneg %p1311
    $region58: #{spade_block.2} parent=5 // pred_check_branch
      %1314 = sbr.rel (%p1312) target = $region60
    $region59: #{spade_block.2} parent=5 // pred_region
      %s1315 = ssub.s32 %s15, 2
      // Predicated region
      $region61: #{spade_block.2} parent=59 // pred_check
        %p1316 = pneg %p232
      $region62: #{spade_block.2} parent=59 // pred_check_branch
        %1318 = sbr.rel (%p1316) target = $region64
      $region63: #{spade_block.2} parent=59 // pred_region
        %s1319 = smul.u32 32, %s26
        %p1320 = scmp.lt.s32.totalorder %s27, 1
        %s1321 = scalar_select %p1320, %s27, 1
        %p1322 = scmp.lt.s32.totalorder %s1319, 31
        %s1323 = scalar_select %p1322, %s1319, 31
        %s1324 = smul.addr %s1321, 32
        %s1325 = sadd.s32 %s1323, %s1324
        %s1326 = smul.addr %s1325, 8
        %s1327 = scalar_lea.vmem %s7, %s1326
      $region64: #{spade_block.2} parent=59 // pred_fallthru
        _
      // Predicated region
      $region65: #{spade_block.2} parent=59 // pred_check
        %p1328 = pneg %p260
      $region66: #{spade_block.2} parent=59 // pred_check_branch
        %1330 = sbr.rel (%p1328) target = $region68
      $region67: #{spade_block.2} parent=59 // pred_region
        %p1331 = scmp.lt.s32.totalorder %s27, 1
        %s1332 = scalar_select %p1331, %s27, 1
        %p1333 = scmp.lt.s32.totalorder %s26, 0
        %s1334 = scalar_select %p1333, %s26, 0
        %s1335 = sadd.s32 %s1334, %s1332
        %s1336 = smul.addr %s1335, 2
        %s1337 = scalar_lea.vmem %s8, %s1336
      $region68: #{spade_block.2} parent=59 // pred_fallthru
        _
    $region60: #{spade_block.2} parent=5 // pred_fallthru
      _
  $region6: #{spade_block.2} parent=0 // loop_footer
    %s19 = sadd.s32 1, %s15
  $region7: #{spade_block.2} parent=0 // loop_footer_branch
    %14 = sbr.rel target = $region3
  $region8: #{spade_block.2} parent=0 // loop_exit
    _

</llo_original>
